<compile_context>
chip_gen: v5e
topology: v5e:2x2
jax: 0.10.0
libtpu: 0.0.40
codegen_flags: <defaults>
</compile_context>

<pallas_src>
import functools

import jax
import jax.numpy as jnp
from jax import lax
from jax.experimental import pallas as pl
from jax.experimental.pallas import tpu as pltpu

EPS = 1e-5


# ------------------------------ Pallas kernel ------------------------------

def _shift_hw(x, s):
    """shifted[:, p, :] = x[:, p + s, :], zero-filled outside [0, HW).

    `s` is a static Python int; the shift acts per-image (axis 1 of a
    (NB, HW, C) buffer), so SAME padding / image boundaries are respected.
    """
    if s == 0:
        return x
    nb, hw, c = x.shape
    pad = jnp.zeros((nb, abs(s), c), x.dtype)
    if s > 0:
        return jnp.concatenate([x[:, s:, :], pad], axis=1)
    return jnp.concatenate([pad, x[:, :hw + s, :]], axis=1)


def idce_kernel(x_ref, w1_ref, b1_ref, w2_ref, b2_ref, w3_ref, b3_ref, o_ref,
                *, H, W):
    """Grid = (image_tiles, n_blocks).  One step = one Bottleneck block applied
    to NB images; the residual stream lives in the resident output block."""
    blk = pl.program_id(1)
    nb, HW, C = x_ref.shape
    P = w1_ref.shape[-1]
    M = nb * HW

    # First block: initialize the resident residual stream.  The output block
    # index is constant along the block axis, so it stays in VMEM for the
    # whole stack and is written back to HBM only once per image tile.
    @pl.when(blk == 0)
    def _():
        o_ref[...] = x_ref[...].astype(o_ref.dtype)

    res = o_ref[...].astype(jnp.float32)              # (NB, HW, C)
    res2d = res.reshape(M, C)

    # ---- conv1 (1x1) + bn1 + relu : one (M, C) x (C, P) matmul ----
    t = jnp.dot(res2d.astype(jnp.bfloat16), w1_ref[0],
                preferred_element_type=jnp.float32)
    t = jnp.maximum(t + b1_ref[0], 0.0)               # (M, P) f32

    # ---- conv2 (3x3, pad=1) + bn2 + relu : single fused K=9*P matmul ----
    # Build the 9 shifted taps per-image in bf16 (one cast), concatenate along
    # the lane axis, and do one (M, 9P) x (9P, P) matmul.
    t_bf = t.astype(jnp.bfloat16).reshape(nb, HW, P)
    zero = jnp.zeros((), jnp.bfloat16)
    col = lax.broadcasted_iota(jnp.int32, (HW, 1), 0) % W
    mask_l = col >= 1           # tap dx = -1 valid
    mask_r = col <= W - 2       # tap dx = +1 valid
    taps = []
    for dy in (-1, 0, 1):                       # kh = dy + 1 (outer)
        vy = _shift_hw(t_bf, dy * W)            # sublane-aligned vertical shift
        for dx in (-1, 0, 1):                   # kw = dx + 1 (inner)
            hx = _shift_hw(vy, dx)
            if dx == -1:
                hx = jnp.where(mask_l, hx, zero)
            elif dx == 1:
                hx = jnp.where(mask_r, hx, zero)
            taps.append(hx)                     # tap k = (dy+1)*3 + (dx+1)
    tap2d = jnp.concatenate(taps, axis=-1).reshape(M, 9 * P)
    t2 = jnp.dot(tap2d, w2_ref[0], preferred_element_type=jnp.float32)
    t2 = jnp.maximum(t2 + b2_ref[0], 0.0)             # (M, P) f32

    # ---- conv3 (1x1) + bn3 + residual add + relu ----
    u = jnp.dot(t2.astype(jnp.bfloat16), w3_ref[0],
                preferred_element_type=jnp.float32)
    out2d = jnp.maximum(u + b3_ref[0] + res2d, 0.0)
    o_ref[...] = out2d.reshape(nb, HW, C).astype(o_ref.dtype)


def idce_forward(x_nhwc, stacked, *, n_blocks, images_per_step=None):
    n, h, w, c = x_nhwc.shape
    hw = h * w
    w1a, b1a, w2a, b2a, w3a, b3a = stacked
    planes = w1a.shape[-1]

    if images_per_step is None:
        # Batch images into the matmul M dimension, but keep >= 2 parallel
        # grid steps when possible so both v7x TensorCores get work.
        images_per_step = max(1, min(8, n // 2))
    nb = images_per_step
    while n % nb:
        nb -= 1

    x3 = x_nhwc.reshape(n, hw, c)
    kernel = functools.partial(idce_kernel, H=h, W=w)

    flops = 2 * n * hw * n_blocks * (c * planes + 9 * planes * planes + planes * c)
    bytes_accessed = int(2 * n * hw * c * 4
                         + sum(int(a.size) * a.dtype.itemsize for a in stacked))
    cost = pl.CostEstimate(flops=int(flops), transcendentals=0,
                           bytes_accessed=bytes_accessed)

    out = pl.pallas_call(
        kernel,
        out_shape=jax.ShapeDtypeStruct((n, hw, c), jnp.float32),
        grid=(n // nb, n_blocks),
        in_specs=[
            pl.BlockSpec((nb, hw, c), lambda i, b: (i, 0, 0)),
            pl.BlockSpec((1,) + w1a.shape[1:], lambda i, b: (b, 0, 0)),
            pl.BlockSpec((1,) + b1a.shape[1:], lambda i, b: (b, 0, 0)),
            pl.BlockSpec((1,) + w2a.shape[1:], lambda i, b: (b, 0, 0)),
            pl.BlockSpec((1,) + b2a.shape[1:], lambda i, b: (b, 0, 0)),
            pl.BlockSpec((1,) + w3a.shape[1:], lambda i, b: (b, 0, 0)),
            pl.BlockSpec((1,) + b3a.shape[1:], lambda i, b: (b, 0, 0)),
        ],
        out_specs=pl.BlockSpec((nb, hw, c), lambda i, b: (i, 0, 0)),
        compiler_params=pltpu.CompilerParams(
            dimension_semantics=("parallel", "arbitrary"),
            vmem_limit_bytes=32 * 1024 * 1024),
        cost_estimate=cost,
    )(x3, w1a, b1a, w2a, b2a, w3a, b3a)
    return out.reshape(n, h, w, c)


# ------------------------------ parameters ---------------------------------

def kaiming_conv(key, cout, cin, kh, kw):
    """kaiming_normal_ (fan_out, relu): std = sqrt(2 / (Cout*kh*kw))."""
    std = (2.0 / (cout * kh * kw)) ** 0.5
    return jax.random.normal(key, (cout, cin, kh, kw), jnp.float32) * std


def bn_eval_fold(c):
    """Module init: gamma=1, beta=0, running_mean=0, running_var=1."""
    scale = jnp.full((c,), 1.0 / jnp.sqrt(1.0 + EPS), jnp.float32)
    bias = jnp.zeros((c,), jnp.float32)
    return scale, bias


def make_idce_params(key, inplanes, planes, n_blocks):
    assert inplanes == planes * 4, "Bottleneck expansion=4 => no downsample path"
    blocks = []
    for _ in range(n_blocks):
        key, k1, k2, k3 = jax.random.split(key, 4)
        w1 = kaiming_conv(k1, planes, inplanes, 1, 1)
        w2 = kaiming_conv(k2, planes, planes, 3, 3)
        w3 = kaiming_conv(k3, planes * 4, planes, 1, 1)
        s1, bb1 = bn_eval_fold(planes)
        s2, bb2 = bn_eval_fold(planes)
        s3, bb3 = bn_eval_fold(planes * 4)
        blocks.append(dict(w1_raw=w1, w2_raw=w2, w3_raw=w3,
                           s1=s1, b1=bb1, s2=s2, b2=bb2, s3=s3, b3=bb3))

    def fold1x1(w_raw, scale):
        # (Cout, Cin, 1, 1) -> (Cin, Cout) with BN scale folded into columns.
        return (w_raw[:, :, 0, 0].T * scale[None, :]).astype(jnp.bfloat16)

    def fold3x3(w_raw, scale):
        # (Cout, Cin, 3, 3) -> (9*Cin, Cout); row block k = kh*3 + kw matches
        # the kernel's tap ordering (k*Cin + cin).
        cout, cin = w_raw.shape[0], w_raw.shape[1]
        wm = jnp.transpose(w_raw, (2, 3, 1, 0)).reshape(9 * cin, cout)
        return (wm * scale[None, :]).astype(jnp.bfloat16)

    stacked = (
        jnp.stack([fold1x1(p["w1_raw"], p["s1"]) for p in blocks]),   # (B, Cin, P)
        jnp.stack([p["b1"][None, :] for p in blocks]),                # (B, 1, P)
        jnp.stack([fold3x3(p["w2_raw"], p["s2"]) for p in blocks]),   # (B, 9P, P)
        jnp.stack([p["b2"][None, :] for p in blocks]),                # (B, 1, P)
        jnp.stack([fold1x1(p["w3_raw"], p["s3"]) for p in blocks]),   # (B, P, Cout)
        jnp.stack([p["b3"][None, :] for p in blocks]),                # (B, 1, Cout)
    )
    return blocks, stacked


# ------------------------- pure-JAX reference check ------------------------

def _ref_conv(x_nhwc, w_oihw):
    w_hwio = jnp.transpose(w_oihw, (2, 3, 1, 0))
    return lax.conv_general_dilated(
        x_nhwc, w_hwio, window_strides=(1, 1), padding="SAME",
        dimension_numbers=("NHWC", "HWIO", "NHWC"))


def ref_forward(x_nhwc, blocks):
    out = x_nhwc
    for p in blocks:
        identity = out
        t = jnp.maximum(_ref_conv(out, p["w1_raw"]) * p["s1"] + p["b1"], 0.0)
        t = jnp.maximum(_ref_conv(t, p["w2_raw"]) * p["s2"] + p["b2"], 0.0)
        t = _ref_conv(t, p["w3_raw"]) * p["s3"] + p["b3"]
        out = jnp.maximum(t + identity, 0.0)
    return out


# ----------------------------------- main -----------------------------------

if __name__ == "__main__":
    key = jax.random.PRNGKey(0)
    kx, kp = jax.random.split(key)

    # Small shapes consistent with the module (Bottleneck, inplanes = planes*4).
    # N=4 gives 2 images per grid step (M = 2*64) and 2 parallel grid steps.
    N, H, W = 4, 8, 8
    planes, n_blocks = 32, 2
    inplanes = planes * 4

    x_nchw = jax.random.normal(kx, (N, inplanes, H, W), jnp.float32)
    x_nhwc = jnp.transpose(x_nchw, (0, 2, 3, 1))  # kernel layout: NHWC

    blocks, stacked = make_idce_params(kp, inplanes, planes, n_blocks)

    out = idce_forward(x_nhwc, stacked, n_blocks=n_blocks)
    out = jax.block_until_ready(out)

    ref = jax.block_until_ready(ref_forward(x_nhwc, blocks))
    assert out.shape == (N, H, W, inplanes)
    rel_err = float(jnp.linalg.norm(out - ref) / (jnp.linalg.norm(ref) + 1e-12))
    assert rel_err < 2e-2, f"relative L2 error too high: {rel_err}"

    print("KERNEL_OK")
</pallas_src>

<mosaic_0001>
module attributes {stable_mosaic.version = 11 : i64} {
  func.func @idce_kernel(%arg0: i32, %arg1: i32, %arg2: memref<2x64x128xf32, #tpu.memory_space<vmem>>, %arg3: memref<1x128x32xbf16, #tpu.memory_space<vmem>>, %arg4: memref<1x1x32xf32, #tpu.memory_space<vmem>>, %arg5: memref<1x288x32xbf16, #tpu.memory_space<vmem>>, %arg6: memref<1x1x32xf32, #tpu.memory_space<vmem>>, %arg7: memref<1x32x128xbf16, #tpu.memory_space<vmem>>, %arg8: memref<1x1x128xf32, #tpu.memory_space<vmem>>, %arg9: memref<2x64x128xf32, #tpu.memory_space<vmem>>) attributes {dimension_semantics = [#tpu.dimension_semantics<parallel>, #tpu.dimension_semantics<arbitrary>], iteration_bounds = array<i64: 2, 2>, scalar_prefetch = 0 : i64, scratch_operands = 0 : i64, tpu.core_type = #tpu.core_type<tc>, window_params = [{transform_indices = @transform_0, window_bounds = array<i64: 2, 64, 128>}, {transform_indices = @transform_1, window_bounds = array<i64: 1, 128, 32>}, {transform_indices = @transform_2, window_bounds = array<i64: 1, 1, 32>}, {transform_indices = @transform_3, window_bounds = array<i64: 1, 288, 32>}, {transform_indices = @transform_4, window_bounds = array<i64: 1, 1, 32>}, {transform_indices = @transform_5, window_bounds = array<i64: 1, 32, 128>}, {transform_indices = @transform_6, window_bounds = array<i64: 1, 1, 128>}, {transform_indices = @transform_7, window_bounds = array<i64: 2, 64, 128>}]} {
    %c0_i32 = arith.constant 0 : i32
    %0 = arith.cmpi eq, %arg1, %c0_i32 : i32
    %1 = arith.extui %0 : i1 to i32
    %c0_i32_0 = arith.constant 0 : i32
    %2 = arith.cmpi ne, %1, %c0_i32_0 : i32
    scf.if %2 {
      %c0_48 = arith.constant 0 : index
      %c0_49 = arith.constant 0 : index
      %c0_50 = arith.constant 0 : index
      %110 = vector.load %arg2[%c0_48, %c0_49, %c0_50] : memref<2x64x128xf32, #tpu.memory_space<vmem>>, vector<2x64x128xf32>
      %c0_51 = arith.constant 0 : index
      %c0_52 = arith.constant 0 : index
      %c0_53 = arith.constant 0 : index
      %111 = vector.load %arg9[%c0_51, %c0_52, %c0_53] : memref<2x64x128xf32, #tpu.memory_space<vmem>>, vector<2x64x128xf32>
      tpu.vector_store %arg9[%c0_51, %c0_52, %c0_53], %110 {strides = array<i32>} : memref<2x64x128xf32, #tpu.memory_space<vmem>>, vector<2x64x128xf32>,
    } else {
    }
    %c0 = arith.constant 0 : index
    %c0_1 = arith.constant 0 : index
    %c0_2 = arith.constant 0 : index
    %3 = vector.load %arg9[%c0, %c0_1, %c0_2] : memref<2x64x128xf32, #tpu.memory_space<vmem>>, vector<2x64x128xf32>
    %4 = vector.shape_cast %3 : vector<2x64x128xf32> to vector<128x128xf32>
    %5 = arith.truncf %4 : vector<128x128xf32> to vector<128x128xbf16>
    %c0_3 = arith.constant 0 : index
    %c0_4 = arith.constant 0 : index
    %c0_5 = arith.constant 0 : index
    %6 = vector.load %arg3[%c0_3, %c0_4, %c0_5] : memref<1x128x32xbf16, #tpu.memory_space<vmem>>, vector<1x128x32xbf16>
    %7 = vector.shape_cast %6 : vector<1x128x32xbf16> to vector<128x32xbf16>
    %cst = arith.constant dense<0.000000e+00> : vector<128x32xf32>
    %8 = tpu.matmul %5, %7, %cst {dimension_numbers = #tpu.dot_dimension_numbers<[1], [0], [0], [1], [0, 0, 1, 1], [], []>} : vector<128x128xbf16>, vector<128x32xbf16>, vector<128x32xf32> -> vector<128x32xf32>
    %c0_6 = arith.constant 0 : index
    %c0_7 = arith.constant 0 : index
    %c0_8 = arith.constant 0 : index
    %9 = vector.load %arg4[%c0_6, %c0_7, %c0_8] : memref<1x1x32xf32, #tpu.memory_space<vmem>>, vector<1x1x32xf32>
    %10 = vector.shape_cast %9 : vector<1x1x32xf32> to vector<1x32xf32>
    %11 = vector.broadcast %10 : vector<1x32xf32> to vector<128x32xf32>
    %12 = arith.addf %8, %11 : vector<128x32xf32>
    %cst_9 = arith.constant 0.000000e+00 : f32
    %13 = vector.broadcast %cst_9 : f32 to vector<128x32xf32>
    %14 = arith.maximumf %12, %13 : vector<128x32xf32>
    %15 = arith.truncf %14 : vector<128x32xf32> to vector<128x32xbf16>
    %16 = vector.shape_cast %15 : vector<128x32xbf16> to vector<2x64x32xbf16>
    %17 = tpu.iota {dimensions = array<i32: 0>} : vector<64x1xi32>
    %c8_i32 = arith.constant 8 : i32
    %c0_i32_10 = arith.constant 0 : i32
    %18 = arith.cmpi eq, %c8_i32, %c0_i32_10 : i32
    %c1_i32 = arith.constant 1 : i32
    %19 = arith.select %18, %c1_i32, %c8_i32 : i32
    %20 = vector.broadcast %19 : i32 to vector<64x1xi32>
    %21 = arith.remsi %17, %20 : vector<64x1xi32>
    %c0_i32_11 = arith.constant 0 : i32
    %22 = vector.broadcast %c0_i32_11 : i32 to vector<64x1xi32>
    %23 = arith.cmpi ne, %21, %22 : vector<64x1xi32>
    %c0_i32_12 = arith.constant 0 : i32
    %24 = vector.broadcast %c0_i32_12 : i32 to vector<64x1xi32>
    %25 = arith.cmpi slt, %21, %24 : vector<64x1xi32>
    %c0_i32_13 = arith.constant 0 : i32
    %26 = arith.cmpi slt, %19, %c0_i32_13 : i32
    %27 = vector.broadcast %26 : i1 to vector<64x1xi1>
    %28 = vector.broadcast %27 : vector<64x1xi1> to vector<64x1xi1>
    %29 = arith.xori %25, %28 : vector<64x1xi1>
    %30 = arith.andi %29, %23 : vector<64x1xi1>
    %31 = vector.broadcast %19 : i32 to vector<64x1xi32>
    %32 = arith.addi %21, %31 : vector<64x1xi32>
    %33 = arith.select %30, %32, %21 : vector<64x1xi1>, vector<64x1xi32>
    %c1_i32_14 = arith.constant 1 : i32
    %34 = vector.broadcast %c1_i32_14 : i32 to vector<64x1xi32>
    %35 = arith.cmpi sge, %33, %34 : vector<64x1xi32>
    %c6_i32 = arith.constant 6 : i32
    %36 = vector.broadcast %c6_i32 : i32 to vector<64x1xi32>
    %37 = arith.cmpi sle, %33, %36 : vector<64x1xi32>
    %cst_15 = arith.constant 0.000000e+00 : bf16
    %38 = vector.broadcast %cst_15 : bf16 to vector<2x8x32xbf16>
    %39 = vector.extract_strided_slice %16 {offsets = [0, 0, 0], sizes = [2, 56, 32], strides = [1, 1, 1]} : vector<2x64x32xbf16> to vector<2x56x32xbf16>
    %40 = tpu.concatenate %38, %39 in 1 : vector<2x8x32xbf16>, vector<2x56x32xbf16> -> vector<2x64x32xbf16>
    %cst_16 = arith.constant 0.000000e+00 : bf16
    %41 = vector.broadcast %cst_16 : bf16 to vector<2x1x32xbf16>
    %42 = vector.extract_strided_slice %40 {offsets = [0, 0, 0], sizes = [2, 63, 32], strides = [1, 1, 1]} : vector<2x64x32xbf16> to vector<2x63x32xbf16>
    %43 = tpu.concatenate %41, %42 in 1 : vector<2x1x32xbf16>, vector<2x63x32xbf16> -> vector<2x64x32xbf16>
    %cst_17 = arith.constant 0.000000e+00 : bf16
    %44 = vector.shape_cast %35 : vector<64x1xi1> to vector<1x64x1xi1>
    %45 = vector.broadcast %44 : vector<1x64x1xi1> to vector<2x64x32xi1>
    %46 = vector.broadcast %cst_17 : bf16 to vector<2x64x32xbf16>
    %47 = arith.select %45, %43, %46 : vector<2x64x32xi1>, vector<2x64x32xbf16>
    %cst_18 = arith.constant 0.000000e+00 : bf16
    %48 = vector.broadcast %cst_18 : bf16 to vector<2x1x32xbf16>
    %49 = vector.extract_strided_slice %40 {offsets = [0, 1, 0], sizes = [2, 63, 32], strides = [1, 1, 1]} : vector<2x64x32xbf16> to vector<2x63x32xbf16>
    %50 = tpu.concatenate %49, %48 in 1 : vector<2x63x32xbf16>, vector<2x1x32xbf16> -> vector<2x64x32xbf16>
    %cst_19 = arith.constant 0.000000e+00 : bf16
    %51 = vector.shape_cast %37 : vector<64x1xi1> to vector<1x64x1xi1>
    %52 = vector.broadcast %51 : vector<1x64x1xi1> to vector<2x64x32xi1>
    %53 = vector.broadcast %cst_19 : bf16 to vector<2x64x32xbf16>
    %54 = arith.select %52, %50, %53 : vector<2x64x32xi1>, vector<2x64x32xbf16>
    %cst_20 = arith.constant 0.000000e+00 : bf16
    %55 = vector.broadcast %cst_20 : bf16 to vector<2x1x32xbf16>
    %56 = vector.extract_strided_slice %16 {offsets = [0, 0, 0], sizes = [2, 63, 32], strides = [1, 1, 1]} : vector<2x64x32xbf16> to vector<2x63x32xbf16>
    %57 = tpu.concatenate %55, %56 in 1 : vector<2x1x32xbf16>, vector<2x63x32xbf16> -> vector<2x64x32xbf16>
    %cst_21 = arith.constant 0.000000e+00 : bf16
    %58 = vector.shape_cast %35 : vector<64x1xi1> to vector<1x64x1xi1>
    %59 = vector.broadcast %58 : vector<1x64x1xi1> to vector<2x64x32xi1>
    %60 = vector.broadcast %cst_21 : bf16 to vector<2x64x32xbf16>
    %61 = arith.select %59, %57, %60 : vector<2x64x32xi1>, vector<2x64x32xbf16>
    %cst_22 = arith.constant 0.000000e+00 : bf16
    %62 = vector.broadcast %cst_22 : bf16 to vector<2x1x32xbf16>
    %63 = vector.extract_strided_slice %16 {offsets = [0, 1, 0], sizes = [2, 63, 32], strides = [1, 1, 1]} : vector<2x64x32xbf16> to vector<2x63x32xbf16>
    %64 = tpu.concatenate %63, %62 in 1 : vector<2x63x32xbf16>, vector<2x1x32xbf16> -> vector<2x64x32xbf16>
    %cst_23 = arith.constant 0.000000e+00 : bf16
    %65 = vector.shape_cast %37 : vector<64x1xi1> to vector<1x64x1xi1>
    %66 = vector.broadcast %65 : vector<1x64x1xi1> to vector<2x64x32xi1>
    %67 = vector.broadcast %cst_23 : bf16 to vector<2x64x32xbf16>
    %68 = arith.select %66, %64, %67 : vector<2x64x32xi1>, vector<2x64x32xbf16>
    %cst_24 = arith.constant 0.000000e+00 : bf16
    %69 = vector.broadcast %cst_24 : bf16 to vector<2x8x32xbf16>
    %70 = vector.extract_strided_slice %16 {offsets = [0, 8, 0], sizes = [2, 56, 32], strides = [1, 1, 1]} : vector<2x64x32xbf16> to vector<2x56x32xbf16>
    %71 = tpu.concatenate %70, %69 in 1 : vector<2x56x32xbf16>, vector<2x8x32xbf16> -> vector<2x64x32xbf16>
    %cst_25 = arith.constant 0.000000e+00 : bf16
    %72 = vector.broadcast %cst_25 : bf16 to vector<2x1x32xbf16>
    %73 = vector.extract_strided_slice %71 {offsets = [0, 0, 0], sizes = [2, 63, 32], strides = [1, 1, 1]} : vector<2x64x32xbf16> to vector<2x63x32xbf16>
    %74 = tpu.concatenate %72, %73 in 1 : vector<2x1x32xbf16>, vector<2x63x32xbf16> -> vector<2x64x32xbf16>
    %cst_26 = arith.constant 0.000000e+00 : bf16
    %75 = vector.shape_cast %35 : vector<64x1xi1> to vector<1x64x1xi1>
    %76 = vector.broadcast %75 : vector<1x64x1xi1> to vector<2x64x32xi1>
    %77 = vector.broadcast %cst_26 : bf16 to vector<2x64x32xbf16>
    %78 = arith.select %76, %74, %77 : vector<2x64x32xi1>, vector<2x64x32xbf16>
    %cst_27 = arith.constant 0.000000e+00 : bf16
    %79 = vector.broadcast %cst_27 : bf16 to vector<2x1x32xbf16>
    %80 = vector.extract_strided_slice %71 {offsets = [0, 1, 0], sizes = [2, 63, 32], strides = [1, 1, 1]} : vector<2x64x32xbf16> to vector<2x63x32xbf16>
    %81 = tpu.concatenate %80, %79 in 1 : vector<2x63x32xbf16>, vector<2x1x32xbf16> -> vector<2x64x32xbf16>
    %cst_28 = arith.constant 0.000000e+00 : bf16
    %82 = vector.shape_cast %37 : vector<64x1xi1> to vector<1x64x1xi1>
    %83 = vector.broadcast %82 : vector<1x64x1xi1> to vector<2x64x32xi1>
    %84 = vector.broadcast %cst_28 : bf16 to vector<2x64x32xbf16>
    %85 = arith.select %83, %81, %84 : vector<2x64x32xi1>, vector<2x64x32xbf16>
    %86 = tpu.concatenate %47, %40, %54, %61, %16, %68, %78, %71, %85 in 2 : vector<2x64x32xbf16>, vector<2x64x32xbf16>, vector<2x64x32xbf16>, vector<2x64x32xbf16>, vector<2x64x32xbf16>, vector<2x64x32xbf16>, vector<2x64x32xbf16>, vector<2x64x32xbf16>, vector<2x64x32xbf16> -> vector<2x64x288xbf16>
    %87 = vector.shape_cast %86 : vector<2x64x288xbf16> to vector<128x288xbf16>
    %c0_29 = arith.constant 0 : index
    %c0_30 = arith.constant 0 : index
    %c0_31 = arith.constant 0 : index
    %88 = vector.load %arg5[%c0_29, %c0_30, %c0_31] : memref<1x288x32xbf16, #tpu.memory_space<vmem>>, vector<1x288x32xbf16>
    %89 = vector.shape_cast %88 : vector<1x288x32xbf16> to vector<288x32xbf16>
    %cst_32 = arith.constant dense<0.000000e+00> : vector<128x32xf32>
    %90 = tpu.matmul %87, %89, %cst_32 {dimension_numbers = #tpu.dot_dimension_numbers<[1], [0], [0], [1], [0, 0, 1, 1], [], []>} : vector<128x288xbf16>, vector<288x32xbf16>, vector<128x32xf32> -> vector<128x32xf32>
    %c0_33 = arith.constant 0 : index
    %c0_34 = arith.constant 0 : index
    %c0_35 = arith.constant 0 : index
    %91 = vector.load %arg6[%c0_33, %c0_34, %c0_35] : memref<1x1x32xf32, #tpu.memory_space<vmem>>, vector<1x1x32xf32>
    %92 = vector.shape_cast %91 : vector<1x1x32xf32> to vector<1x32xf32>
    %93 = vector.broadcast %92 : vector<1x32xf32> to vector<128x32xf32>
    %94 = arith.addf %90, %93 : vector<128x32xf32>
    %cst_36 = arith.constant 0.000000e+00 : f32
    %95 = vector.broadcast %cst_36 : f32 to vector<128x32xf32>
    %96 = arith.maximumf %94, %95 : vector<128x32xf32>
    %97 = arith.truncf %96 : vector<128x32xf32> to vector<128x32xbf16>
    %c0_37 = arith.constant 0 : index
    %c0_38 = arith.constant 0 : index
    %c0_39 = arith.constant 0 : index
    %98 = vector.load %arg7[%c0_37, %c0_38, %c0_39] : memref<1x32x128xbf16, #tpu.memory_space<vmem>>, vector<1x32x128xbf16>
    %99 = vector.shape_cast %98 : vector<1x32x128xbf16> to vector<32x128xbf16>
    %cst_40 = arith.constant dense<0.000000e+00> : vector<128x128xf32>
    %100 = tpu.matmul %97, %99, %cst_40 {dimension_numbers = #tpu.dot_dimension_numbers<[1], [0], [0], [1], [0, 0, 1, 1], [], []>} : vector<128x32xbf16>, vector<32x128xbf16>, vector<128x128xf32> -> vector<128x128xf32>
    %c0_41 = arith.constant 0 : index
    %c0_42 = arith.constant 0 : index
    %c0_43 = arith.constant 0 : index
    %101 = vector.load %arg8[%c0_41, %c0_42, %c0_43] : memref<1x1x128xf32, #tpu.memory_space<vmem>>, vector<1x1x128xf32>
    %102 = vector.shape_cast %101 : vector<1x1x128xf32> to vector<1x128xf32>
    %103 = vector.broadcast %102 : vector<1x128xf32> to vector<128x128xf32>
    %104 = arith.addf %100, %103 : vector<128x128xf32>
    %105 = arith.addf %104, %4 : vector<128x128xf32>
    %cst_44 = arith.constant 0.000000e+00 : f32
    %106 = vector.broadcast %cst_44 : f32 to vector<128x128xf32>
    %107 = arith.maximumf %105, %106 : vector<128x128xf32>
    %108 = vector.shape_cast %107 : vector<128x128xf32> to vector<2x64x128xf32>
    %c0_45 = arith.constant 0 : index
    %c0_46 = arith.constant 0 : index
    %c0_47 = arith.constant 0 : index
    %109 = vector.load %arg9[%c0_45, %c0_46, %c0_47] : memref<2x64x128xf32, #tpu.memory_space<vmem>>, vector<2x64x128xf32>
    tpu.vector_store %arg9[%c0_45, %c0_46, %c0_47], %108 {strides = array<i32>} : memref<2x64x128xf32, #tpu.memory_space<vmem>>, vector<2x64x128xf32>,
    return
  }
  func.func @transform_0(%arg0: i32, %arg1: i32) -> (i32, i32, i32) {
    %c0_i32 = arith.constant 0 : i32
    %c0_i32_0 = arith.constant 0 : i32
    %c0_i32_1 = arith.constant 0 : i32
    return %arg0, %c0_i32, %c0_i32_0 : i32, i32, i32
  }
  func.func @transform_1(%arg0: i32, %arg1: i32) -> (i32, i32, i32) {
    %c0_i32 = arith.constant 0 : i32
    %c0_i32_0 = arith.constant 0 : i32
    %c0_i32_1 = arith.constant 0 : i32
    return %arg1, %c0_i32, %c0_i32_0 : i32, i32, i32
  }
  func.func @transform_2(%arg0: i32, %arg1: i32) -> (i32, i32, i32) {
    %c0_i32 = arith.constant 0 : i32
    %c0_i32_0 = arith.constant 0 : i32
    %c0_i32_1 = arith.constant 0 : i32
    return %arg1, %c0_i32, %c0_i32_0 : i32, i32, i32
  }
  func.func @transform_3(%arg0: i32, %arg1: i32) -> (i32, i32, i32) {
    %c0_i32 = arith.constant 0 : i32
    %c0_i32_0 = arith.constant 0 : i32
    %c0_i32_1 = arith.constant 0 : i32
    return %arg1, %c0_i32, %c0_i32_0 : i32, i32, i32
  }
  func.func @transform_4(%arg0: i32, %arg1: i32) -> (i32, i32, i32) {
    %c0_i32 = arith.constant 0 : i32
    %c0_i32_0 = arith.constant 0 : i32
    %c0_i32_1 = arith.constant 0 : i32
    return %arg1, %c0_i32, %c0_i32_0 : i32, i32, i32
  }
  func.func @transform_5(%arg0: i32, %arg1: i32) -> (i32, i32, i32) {
    %c0_i32 = arith.constant 0 : i32
    %c0_i32_0 = arith.constant 0 : i32
    %c0_i32_1 = arith.constant 0 : i32
    return %arg1, %c0_i32, %c0_i32_0 : i32, i32, i32
  }
  func.func @transform_6(%arg0: i32, %arg1: i32) -> (i32, i32, i32) {
    %c0_i32 = arith.constant 0 : i32
    %c0_i32_0 = arith.constant 0 : i32
    %c0_i32_1 = arith.constant 0 : i32
    return %arg1, %c0_i32, %c0_i32_0 : i32, i32, i32
  }
  func.func @transform_7(%arg0: i32, %arg1: i32) -> (i32, i32, i32) {
    %c0_i32 = arith.constant 0 : i32
    %c0_i32_0 = arith.constant 0 : i32
    %c0_i32_1 = arith.constant 0 : i32
    return %arg0, %c0_i32, %c0_i32_0 : i32, i32, i32
  }
}

</mosaic_0001>

<llo_original>
// kernel: tpu_custom_call.1
$region0: #{tpu_custom_call.1}
  #allocation0 [shape = 'u32[]', space=smem, size = 0x4, offset = 0x4, fixed_abs, tag = 'smem constant byte address 0x4 - core index']
  #allocation1 [shape = 'u32[72,128]{1,0:T(1,128)}', space=vmem, size = 0x9000, scoped, tag = 'internal scratch']
  %s0 = inlined_call_operand.vmem [shape: f32[4,64,128], index: 0, kind: input, shape index: {}]
  %s1 = inlined_call_operand.vmem [shape: bf16[2,128,32], index: 1, kind: input, shape index: {}]
  %s2 = inlined_call_operand.vmem [shape: f32[2,1,32], index: 2, kind: input, shape index: {}]
  %s3 = inlined_call_operand.vmem [shape: bf16[2,288,32], index: 3, kind: input, shape index: {}]
  %s4 = inlined_call_operand.vmem [shape: f32[2,1,32], index: 4, kind: input, shape index: {}]
  %s5 = inlined_call_operand.vmem [shape: bf16[2,32,128], index: 5, kind: input, shape index: {}]
  %s6 = inlined_call_operand.vmem [shape: f32[2,1,128], index: 6, kind: input, shape index: {}]
  %s7 = inlined_call_operand.hbm [shape: f32[4,64,128], index: 7, kind: output, shape index: {}]
  %s8 = sld [smem:[#allocation0]]
  $region65: #{tpu_custom_call.1} parent=0
    _
  %s10 = ssub.s32 1, %s8
  %s11 = scalar_select 0, %s10, %s8
  $region1: #{tpu_custom_call.1} parent=0
    #allocation2 [shape = 'u8[131072]{0}', space=vmem, size = 0x20000, scoped, tag = 'output window, operand 0']
    #allocation3 [shape = 's32[2]{0}', space=sflag, size = 0x8, scoped, tag = 'scoped memory for tpu_custom_call.1']
    %12 = vsyncpa [#allocation3], 0
    %s13 = scalar_lea.sflag [#allocation3], 1
    %14 = vsyncpa %s13, 0
    loop: start=0, step=1, limit=6
    $region2: #{tpu_custom_call.1} parent=1 // loop_pre_header
      _
    $region3: #{tpu_custom_call.1} parent=1 // loop_header
      %s16 = sphi 0, %s20
      %p17 = scmp.ge.s32.totalorder %s16, 6
      %s23 = sphi 0, %s35
      %s24 = sphi 0, %s31
      %s25 = sphi 0, %s23
      %s26 = sphi 0, %s24
      %s27 = sphi 0, %s25
      %s28 = sphi 0, %s26
      %s38 = sphi 0, %s40
      %s41 = sphi 0, %s38
      %s42 = sphi 0, %s41
      %s58 = sphi 0, %s42
      %s64 = sphi 0, %s66
      %s67 = sphi 0, %s64
      %s68 = sphi 0, %s67
      %s84 = sphi 0, %s68
      %s90 = sphi 0, %s92
      %s93 = sphi 0, %s90
      %s94 = sphi 0, %s93
      %s110 = sphi 0, %s94
      %s116 = sphi 0, %s118
      %s119 = sphi 0, %s116
      %s120 = sphi 0, %s119
      %s136 = sphi 0, %s120
      %s142 = sphi 0, %s144
      %s145 = sphi 0, %s142
      %s146 = sphi 0, %s145
      %s162 = sphi 0, %s146
      %s168 = sphi 0, %s170
      %s171 = sphi 0, %s168
      %s172 = sphi 0, %s171
      %s188 = sphi 0, %s172
      %s194 = sphi 0, %s196
      %s197 = sphi 0, %s194
      %s198 = sphi 0, %s197
      %s214 = sphi 0, %s198
      %s220 = sphi 0, %s222
      %s223 = sphi 0, %s220
      %s224 = sphi 0, %s223
      %s240 = sphi 0, %s224
    $region4: #{tpu_custom_call.1} parent=1 // loop_header_branch
      %19 = sbr.rel (%p17) target = $region8
    $region5: #{tpu_custom_call.1} parent=1 // loop_body
      %s21 = ssub.s32 %s16, 1
      %s22 = ssub.s32 %s16, 2
      %s29 = sadd.s32 1, %s24
      %p30 = scmp.ge.s32.totalorder %s29, 2
      %s31 = scalar_select %p30, 0, %s29
      %s32 = sadd.s32 1, %s23
      %s33 = scalar_select %p30, %s32, %s23
      %p34 = scmp.ge.s32.totalorder %s33, 2
      %s35 = scalar_select %p34, 0, %s33
      %s36 = ssub.s32 %s23, %s35
      %p37 = scmp.eq.s32.totalorder %s36, 0
      %s39 = sadd.s32 %s38, 1
      %s40 = scalar_select %p37, %s38, %s39
      %p43 = pneg %p37
      %p44 = scmp.eq.s32.totalorder %s16, 3
      %p45 = por %p43, %p44
      %p46 = scmp.ne.s32.totalorder %s38, %s41
      %p47 = scmp.eq.s32.totalorder %s16, 0
      %p48 = por %p46, %p47
      %p49 = scmp.ne.s32.totalorder %s38, %s41
      %p50 = scmp.eq.s32.totalorder %s21, 3
      %p51 = por %p49, %p50
      %p52 = scmp.ne.s32.totalorder %s41, %s42
      %p53 = scmp.eq.s32.totalorder %s21, 0
      %p54 = por %p52, %p53
      %p55 = scmp.ne.s32.totalorder %s41, %s42
      %p56 = scmp.eq.s32.totalorder %s22, 3
      %p57 = por %p55, %p56
      %p59 = scmp.ne.s32.totalorder %s42, %s58
      %p60 = scmp.eq.s32.totalorder %s22, 0
      %p61 = por %p59, %p60
      %s62 = ssub.s32 %s24, %s31
      %p63 = scmp.eq.s32.totalorder %s62, 0
      %s65 = sadd.s32 %s64, 1
      %s66 = scalar_select %p63, %s64, %s65
      %p69 = pneg %p63
      %p70 = scmp.eq.s32.totalorder %s16, 3
      %p71 = por %p69, %p70
      %p72 = scmp.ne.s32.totalorder %s64, %s67
      %p73 = scmp.eq.s32.totalorder %s16, 0
      %p74 = por %p72, %p73
      %p75 = scmp.ne.s32.totalorder %s64, %s67
      %p76 = scmp.eq.s32.totalorder %s21, 3
      %p77 = por %p75, %p76
      %p78 = scmp.ne.s32.totalorder %s67, %s68
      %p79 = scmp.eq.s32.totalorder %s21, 0
      %p80 = por %p78, %p79
      %p81 = scmp.ne.s32.totalorder %s67, %s68
      %p82 = scmp.eq.s32.totalorder %s22, 3
      %p83 = por %p81, %p82
      %p85 = scmp.ne.s32.totalorder %s68, %s84
      %p86 = scmp.eq.s32.totalorder %s22, 0
      %p87 = por %p85, %p86
      %s88 = ssub.s32 %s24, %s31
      %p89 = scmp.eq.s32.totalorder %s88, 0
      %s91 = sadd.s32 %s90, 1
      %s92 = scalar_select %p89, %s90, %s91
      %p95 = pneg %p89
      %p96 = scmp.eq.s32.totalorder %s16, 3
      %p97 = por %p95, %p96
      %p98 = scmp.ne.s32.totalorder %s90, %s93
      %p99 = scmp.eq.s32.totalorder %s16, 0
      %p100 = por %p98, %p99
      %p101 = scmp.ne.s32.totalorder %s90, %s93
      %p102 = scmp.eq.s32.totalorder %s21, 3
      %p103 = por %p101, %p102
      %p104 = scmp.ne.s32.totalorder %s93, %s94
      %p105 = scmp.eq.s32.totalorder %s21, 0
      %p106 = por %p104, %p105
      %p107 = scmp.ne.s32.totalorder %s93, %s94
      %p108 = scmp.eq.s32.totalorder %s22, 3
      %p109 = por %p107, %p108
      %p111 = scmp.ne.s32.totalorder %s94, %s110
      %p112 = scmp.eq.s32.totalorder %s22, 0
      %p113 = por %p111, %p112
      %s114 = ssub.s32 %s24, %s31
      %p115 = scmp.eq.s32.totalorder %s114, 0
      %s117 = sadd.s32 %s116, 1
      %s118 = scalar_select %p115, %s116, %s117
      %p121 = pneg %p115
      %p122 = scmp.eq.s32.totalorder %s16, 3
      %p123 = por %p121, %p122
      %p124 = scmp.ne.s32.totalorder %s116, %s119
      %p125 = scmp.eq.s32.totalorder %s16, 0
      %p126 = por %p124, %p125
      %p127 = scmp.ne.s32.totalorder %s116, %s119
      %p128 = scmp.eq.s32.totalorder %s21, 3
      %p129 = por %p127, %p128
      %p130 = scmp.ne.s32.totalorder %s119, %s120
      %p131 = scmp.eq.s32.totalorder %s21, 0
      %p132 = por %p130, %p131
      %p133 = scmp.ne.s32.totalorder %s119, %s120
      %p134 = scmp.eq.s32.totalorder %s22, 3
      %p135 = por %p133, %p134
      %p137 = scmp.ne.s32.totalorder %s120, %s136
      %p138 = scmp.eq.s32.totalorder %s22, 0
      %p139 = por %p137, %p138
      %s140 = ssub.s32 %s24, %s31
      %p141 = scmp.eq.s32.totalorder %s140, 0
      %s143 = sadd.s32 %s142, 1
      %s144 = scalar_select %p141, %s142, %s143
      %p147 = pneg %p141
      %p148 = scmp.eq.s32.totalorder %s16, 3
      %p149 = por %p147, %p148
      %p150 = scmp.ne.s32.totalorder %s142, %s145
      %p151 = scmp.eq.s32.totalorder %s16, 0
      %p152 = por %p150, %p151
      %p153 = scmp.ne.s32.totalorder %s142, %s145
      %p154 = scmp.eq.s32.totalorder %s21, 3
      %p155 = por %p153, %p154
      %p156 = scmp.ne.s32.totalorder %s145, %s146
      %p157 = scmp.eq.s32.totalorder %s21, 0
      %p158 = por %p156, %p157
      %p159 = scmp.ne.s32.totalorder %s145, %s146
      %p160 = scmp.eq.s32.totalorder %s22, 3
      %p161 = por %p159, %p160
      %p163 = scmp.ne.s32.totalorder %s146, %s162
      %p164 = scmp.eq.s32.totalorder %s22, 0
      %p165 = por %p163, %p164
      %s166 = ssub.s32 %s24, %s31
      %p167 = scmp.eq.s32.totalorder %s166, 0
      %s169 = sadd.s32 %s168, 1
      %s170 = scalar_select %p167, %s168, %s169
      %p173 = pneg %p167
      %p174 = scmp.eq.s32.totalorder %s16, 3
      %p175 = por %p173, %p174
      %p176 = scmp.ne.s32.totalorder %s168, %s171
      %p177 = scmp.eq.s32.totalorder %s16, 0
      %p178 = por %p176, %p177
      %p179 = scmp.ne.s32.totalorder %s168, %s171
      %p180 = scmp.eq.s32.totalorder %s21, 3
      %p181 = por %p179, %p180
      %p182 = scmp.ne.s32.totalorder %s171, %s172
      %p183 = scmp.eq.s32.totalorder %s21, 0
      %p184 = por %p182, %p183
      %p185 = scmp.ne.s32.totalorder %s171, %s172
      %p186 = scmp.eq.s32.totalorder %s22, 3
      %p187 = por %p185, %p186
      %p189 = scmp.ne.s32.totalorder %s172, %s188
      %p190 = scmp.eq.s32.totalorder %s22, 0
      %p191 = por %p189, %p190
      %s192 = ssub.s32 %s24, %s31
      %p193 = scmp.eq.s32.totalorder %s192, 0
      %s195 = sadd.s32 %s194, 1
      %s196 = scalar_select %p193, %s194, %s195
      %p199 = pneg %p193
      %p200 = scmp.eq.s32.totalorder %s16, 3
      %p201 = por %p199, %p200
      %p202 = scmp.ne.s32.totalorder %s194, %s197
      %p203 = scmp.eq.s32.totalorder %s16, 0
      %p204 = por %p202, %p203
      %p205 = scmp.ne.s32.totalorder %s194, %s197
      %p206 = scmp.eq.s32.totalorder %s21, 3
      %p207 = por %p205, %p206
      %p208 = scmp.ne.s32.totalorder %s197, %s198
      %p209 = scmp.eq.s32.totalorder %s21, 0
      %p210 = por %p208, %p209
      %p211 = scmp.ne.s32.totalorder %s197, %s198
      %p212 = scmp.eq.s32.totalorder %s22, 3
      %p213 = por %p211, %p212
      %p215 = scmp.ne.s32.totalorder %s198, %s214
      %p216 = scmp.eq.s32.totalorder %s22, 0
      %p217 = por %p215, %p216
      %s218 = ssub.s32 %s23, %s35
      %p219 = scmp.eq.s32.totalorder %s218, 0
      %s221 = sadd.s32 %s220, 1
      %s222 = scalar_select %p219, %s220, %s221
      %p225 = pneg %p219
      %p226 = scmp.eq.s32.totalorder %s16, 3
      %p227 = por %p225, %p226
      %p228 = scmp.ne.s32.totalorder %s220, %s223
      %p229 = scmp.eq.s32.totalorder %s16, 0
      %p230 = por %p228, %p229
      %p231 = scmp.ne.s32.totalorder %s220, %s223
      %p232 = scmp.eq.s32.totalorder %s21, 3
      %p233 = por %p231, %p232
      %p234 = scmp.ne.s32.totalorder %s223, %s224
      %p235 = scmp.eq.s32.totalorder %s21, 0
      %p236 = por %p234, %p235
      %p237 = scmp.ne.s32.totalorder %s223, %s224
      %p238 = scmp.eq.s32.totalorder %s22, 3
      %p239 = por %p237, %p238
      %p241 = scmp.ne.s32.totalorder %s224, %s240
      %p242 = scmp.eq.s32.totalorder %s22, 0
      %p243 = por %p241, %p242
      %p244 = scmp.le.s32.totalorder 1, %s16
      %p245 = scmp.lt.s32.totalorder %s16, 5
      %p246 = pnand %p244, %p245
      %p247 = pneg %p246
      // Predicated region
      $region9: #{tpu_custom_call.1} parent=5 // pred_check
        _
      $region10: #{tpu_custom_call.1} parent=5 // pred_check_branch
        %249 = sbr.rel (%p246) target = $region12
      $region11: #{tpu_custom_call.1} parent=5 // pred_region
        %s250 = ssub.s32 %s16, 1
      $region12: #{tpu_custom_call.1} parent=5 // pred_fallthru
        _
      %p251 = scmp.lt.s32.totalorder %s16, 4
      // Predicated region
      $region13: #{tpu_custom_call.1} parent=5 // pred_check
        %p252 = pneg %p251
      $region14: #{tpu_custom_call.1} parent=5 // pred_check_branch
        %254 = sbr.rel (%p252) target = $region16
      $region15: #{tpu_custom_call.1} parent=5 // pred_region
        // Predicated region
        $region17: #{tpu_custom_call.1} parent=15 // pred_check
          %p255 = pneg %p48
        $region18: #{tpu_custom_call.1} parent=15 // pred_check_branch
          %257 = sbr.rel (%p255) target = $region20
        $region19: #{tpu_custom_call.1} parent=15 // pred_region
          %s258 = smul.u32 2, %s23
          %p259 = scmp.lt.s32.totalorder %s258, 3
          %s260 = scalar_select %p259, %s258, 3
          %s261 = smul.addr %s260, 8
          %s262 = smul.addr %s261, 8
          %s263 = scalar_lea.vmem %s0, %s262
          %s264 = smul.u32 2, %s23
        $region20: #{tpu_custom_call.1} parent=15 // pred_fallthru
          _
        // Predicated region
        $region21: #{tpu_custom_call.1} parent=15 // pred_check
          %p265 = pneg %p74
        $region22: #{tpu_custom_call.1} parent=15 // pred_check_branch
          %267 = sbr.rel (%p265) target = $region24
        $region23: #{tpu_custom_call.1} parent=15 // pred_region
          %p268 = scmp.lt.s32.totalorder %s24, 1
          %s269 = scalar_select %p268, %s24, 1
          %s270 = smul.addr %s269, 16
          %s271 = smul.addr %s270, 4
          %s272 = scalar_lea.vmem %s1, %s271
        $region24: #{tpu_custom_call.1} parent=15 // pred_fallthru
          _
        // Predicated region
        $region25: #{tpu_custom_call.1} parent=15 // pred_check
          %p273 = pneg %p100
        $region26: #{tpu_custom_call.1} parent=15 // pred_check_branch
          %275 = sbr.rel (%p273) target = $region28
        $region27: #{tpu_custom_call.1} parent=15 // pred_region
          %p276 = scmp.lt.s32.totalorder %s24, 1
          %s277 = scalar_select %p276, %s24, 1
          %s278 = scalar_lea.vmem %s2, %s277
        $region28: #{tpu_custom_call.1} parent=15 // pred_fallthru
          _
        // Predicated region
        $region29: #{tpu_custom_call.1} parent=15 // pred_check
          %p279 = pneg %p126
        $region30: #{tpu_custom_call.1} parent=15 // pred_check_branch
          %281 = sbr.rel (%p279) target = $region32
        $region31: #{tpu_custom_call.1} parent=15 // pred_region
          %p282 = scmp.lt.s32.totalorder %s24, 1
          %s283 = scalar_select %p282, %s24, 1
          %s284 = smul.addr %s283, 36
          %s285 = smul.addr %s284, 4
          %s286 = scalar_lea.vmem %s3, %s285
        $region32: #{tpu_custom_call.1} parent=15 // pred_fallthru
          _
        // Predicated region
        $region33: #{tpu_custom_call.1} parent=15 // pred_check
          %p287 = pneg %p152
        $region34: #{tpu_custom_call.1} parent=15 // pred_check_branch
          %289 = sbr.rel (%p287) target = $region36
        $region35: #{tpu_custom_call.1} parent=15 // pred_region
          %p290 = scmp.lt.s32.totalorder %s24, 1
          %s291 = scalar_select %p290, %s24, 1
          %s292 = scalar_lea.vmem %s4, %s291
        $region36: #{tpu_custom_call.1} parent=15 // pred_fallthru
          _
        // Predicated region
        $region37: #{tpu_custom_call.1} parent=15 // pred_check
          %p293 = pneg %p178
        $region38: #{tpu_custom_call.1} parent=15 // pred_check_branch
          %295 = sbr.rel (%p293) target = $region40
        $region39: #{tpu_custom_call.1} parent=15 // pred_region
          %p296 = scmp.lt.s32.totalorder %s24, 1
          %s297 = scalar_select %p296, %s24, 1
          %s298 = smul.addr %s297, 4
          %s299 = smul.addr %s298, 4
          %s300 = scalar_lea.vmem %s5, %s299
        $region40: #{tpu_custom_call.1} parent=15 // pred_fallthru
          _
        // Predicated region
        $region41: #{tpu_custom_call.1} parent=15 // pred_check
          %p301 = pneg %p204
        $region42: #{tpu_custom_call.1} parent=15 // pred_check_branch
          %303 = sbr.rel (%p301) target = $region44
        $region43: #{tpu_custom_call.1} parent=15 // pred_region
          %p304 = scmp.lt.s32.totalorder %s24, 1
          %s305 = scalar_select %p304, %s24, 1
          %s306 = scalar_lea.vmem %s6, %s305
        $region44: #{tpu_custom_call.1} parent=15 // pred_fallthru
          _
      $region16: #{tpu_custom_call.1} parent=5 // pred_fallthru
        _
      %p307 = scmp.le.s32.totalorder 1, %s16
      %p308 = scmp.lt.s32.totalorder %s16, 5
      %p309 = pnand %p307, %p308
      %p310 = pneg %p309
      // Predicated region
      $region45: #{tpu_custom_call.1} parent=5 // pred_check
        _
      $region46: #{tpu_custom_call.1} parent=5 // pred_check_branch
        %312 = sbr.rel (%p309) target = $region48
      $region47: #{tpu_custom_call.1} parent=5 // pred_region
        %s313 = ssub.s32 %s16, 1
        %s314 = smul.u32 2, %s25
        %p315 = scmp.lt.s32.totalorder %s314, 3
        %s316 = scalar_select %p315, %s314, 3
        %s317 = smul.addr %s316, 8
        %s318 = smul.addr %s317, 8
        %s319 = scalar_lea.vmem %s0, %s318
        %p320 = pneg %p54
        %p321 = pneg %p51
        %p322 = scmp.lt.s32.totalorder %s26, 1
        %s323 = scalar_select %p322, %s26, 1
        %s324 = smul.addr %s323, 16
        %s325 = smul.addr %s324, 4
        %s326 = scalar_lea.vmem %s1, %s325
        %p327 = pneg %p80
        %p328 = pneg %p77
        %p329 = scmp.lt.s32.totalorder %s26, 1
        %s330 = scalar_select %p329, %s26, 1
        %s331 = scalar_lea.vmem %s2, %s330
        %p332 = pneg %p106
        %p333 = pneg %p103
        %p334 = scmp.lt.s32.totalorder %s26, 1
        %s335 = scalar_select %p334, %s26, 1
        %s336 = smul.addr %s335, 36
        %s337 = smul.addr %s336, 4
        %s338 = scalar_lea.vmem %s3, %s337
        %p339 = pneg %p132
        %p340 = pneg %p129
        %p341 = scmp.lt.s32.totalorder %s26, 1
        %s342 = scalar_select %p341, %s26, 1
        %s343 = scalar_lea.vmem %s4, %s342
        %p344 = pneg %p158
        %p345 = pneg %p155
        %p346 = scmp.lt.s32.totalorder %s26, 1
        %s347 = scalar_select %p346, %s26, 1
        %s348 = smul.addr %s347, 4
        %s349 = smul.addr %s348, 4
        %s350 = scalar_lea.vmem %s5, %s349
        %p351 = pneg %p184
        %p352 = pneg %p181
        %p353 = scmp.lt.s32.totalorder %s26, 1
        %s354 = scalar_select %p353, %s26, 1
        %s355 = scalar_lea.vmem %s6, %s354
        %p356 = pneg %p210
        %p357 = pneg %p207
        %p358 = pneg %p236
        %p359 = pneg %p233
        %s360 = sand.u32 %s223, 1
        %s361 = scalar_lea.sflag [#allocation3], %s360
        %s362 = sand.u32 %s223, 1
        %s363 = smul.addr %s362, 128
        %s364 = scalar_lea.vmem [#allocation2], %s363
        %s365 = smul.u32 2, %s25
        %p366 = scmp.lt.s32.totalorder %s365, 3
        %s367 = scalar_select %p366, %s365, 3
        %s368 = smul.addr %s367, 8
        %s369 = smul.addr %s368, 8
        %s370 = scalar_lea.vmem %s0, %s369
        %s371 = smul.u32 2, %s25
        %p372 = scmp.lt.s32.totalorder %s26, 1
        %s373 = scalar_select %p372, %s26, 1
        %s374 = smul.addr %s373, 16
        %s375 = smul.addr %s374, 4
        %s376 = scalar_lea.vmem %s1, %s375
        %p377 = scmp.lt.s32.totalorder %s26, 1
        %s378 = scalar_select %p377, %s26, 1
        %s379 = scalar_lea.vmem %s2, %s378
        %p380 = scmp.lt.s32.totalorder %s26, 1
        %s381 = scalar_select %p380, %s26, 1
        %s382 = smul.addr %s381, 36
        %s383 = smul.addr %s382, 4
        %s384 = scalar_lea.vmem %s3, %s383
        %p385 = scmp.lt.s32.totalorder %s26, 1
        %s386 = scalar_select %p385, %s26, 1
        %s387 = scalar_lea.vmem %s4, %s386
        %p388 = scmp.lt.s32.totalorder %s26, 1
        %s389 = scalar_select %p388, %s26, 1
        %s390 = smul.addr %s389, 4
        %s391 = smul.addr %s390, 4
        %s392 = scalar_lea.vmem %s5, %s391
        %p393 = scmp.lt.s32.totalorder %s26, 1
        %s394 = scalar_select %p393, %s26, 1
        %s395 = scalar_lea.vmem %s6, %s394
        %s396 = smul.u32 2, %s25
        %p400 = scmp.eq.s32.totalorder %s26, 0
        // Predicated region
        $region49: #{tpu_custom_call.1} parent=47 // pred_check
          %p401 = pneg %p400
        $region50: #{tpu_custom_call.1} parent=47 // pred_check_branch
          %403 = sbr.rel (%p401) target = $region52
        $region51: #{tpu_custom_call.1} parent=47 // pred_region
          %v404 = vld [vmem:[%s370] sm:$0xff]
          %v405 = vld [vmem:[%s370 + $0x8] sm:$0xff]
          %v406 = vld [vmem:[%s370 + $0x10] sm:$0xff]
          %v407 = vld [vmem:[%s370 + $0x18] sm:$0xff]
          %v408 = vld [vmem:[%s370 + $0x20] sm:$0xff]
          %v409 = vld [vmem:[%s370 + $0x28] sm:$0xff]
          %v410 = vld [vmem:[%s370 + $0x30] sm:$0xff]
          %v411 = vld [vmem:[%s370 + $0x38] sm:$0xff]
          %v412 = vld [vmem:[%s370 + $0x40] sm:$0xff]
          %v413 = vld [vmem:[%s370 + $0x48] sm:$0xff]
          %v414 = vld [vmem:[%s370 + $0x50] sm:$0xff]
          %v415 = vld [vmem:[%s370 + $0x58] sm:$0xff]
          %v416 = vld [vmem:[%s370 + $0x60] sm:$0xff]
          %v417 = vld [vmem:[%s370 + $0x68] sm:$0xff]
          %v418 = vld [vmem:[%s370 + $0x70] sm:$0xff]
          %v419 = vld [vmem:[%s370 + $0x78] sm:$0xff]
          %420 = vst [vmem:[%s364] sm:$0xff] %v404
          %421 = vst [vmem:[%s364 + $0x8] sm:$0xff] %v405
          %422 = vst [vmem:[%s364 + $0x10] sm:$0xff] %v406
          %423 = vst [vmem:[%s364 + $0x18] sm:$0xff] %v407
          %424 = vst [vmem:[%s364 + $0x20] sm:$0xff] %v408
          %425 = vst [vmem:[%s364 + $0x28] sm:$0xff] %v409
          %426 = vst [vmem:[%s364 + $0x30] sm:$0xff] %v410
          %427 = vst [vmem:[%s364 + $0x38] sm:$0xff] %v411
          %428 = vst [vmem:[%s364 + $0x40] sm:$0xff] %v412
          %429 = vst [vmem:[%s364 + $0x48] sm:$0xff] %v413
          %430 = vst [vmem:[%s364 + $0x50] sm:$0xff] %v414
          %431 = vst [vmem:[%s364 + $0x58] sm:$0xff] %v415
          %432 = vst [vmem:[%s364 + $0x60] sm:$0xff] %v416
          %433 = vst [vmem:[%s364 + $0x68] sm:$0xff] %v417
          %434 = vst [vmem:[%s364 + $0x70] sm:$0xff] %v418
          %435 = vst [vmem:[%s364 + $0x78] sm:$0xff] %v419
        $region52: #{tpu_custom_call.1} parent=47 // pred_fallthru
          _
        %v436 = vld [vmem:[%s364] sm:$0xff]
        %v437 = vld [vmem:[%s364 + $0x8] sm:$0xff]
        %v438 = vld [vmem:[%s364 + $0x10] sm:$0xff]
        %v439 = vld [vmem:[%s364 + $0x18] sm:$0xff]
        %v440 = vld [vmem:[%s364 + $0x20] sm:$0xff]
        %v441 = vld [vmem:[%s364 + $0x28] sm:$0xff]
        %v442 = vld [vmem:[%s364 + $0x30] sm:$0xff]
        %v443 = vld [vmem:[%s364 + $0x38] sm:$0xff]
        %v444 = vld [vmem:[%s364 + $0x40] sm:$0xff]
        %v445 = vld [vmem:[%s364 + $0x48] sm:$0xff]
        %v446 = vld [vmem:[%s364 + $0x50] sm:$0xff]
        %v447 = vld [vmem:[%s364 + $0x58] sm:$0xff]
        %v448 = vld [vmem:[%s364 + $0x60] sm:$0xff]
        %v449 = vld [vmem:[%s364 + $0x68] sm:$0xff]
        %v450 = vld [vmem:[%s364 + $0x70] sm:$0xff]
        %v451 = vld [vmem:[%s364 + $0x78] sm:$0xff]
        %v452 = vpack.c.bf16 %v437, %v436
        %v453 = vpack.c.bf16 %v439, %v438
        %v454 = vpack.c.bf16 %v441, %v440
        %v455 = vpack.c.bf16 %v443, %v442
        %v456 = vpack.c.bf16 %v445, %v444
        %v457 = vpack.c.bf16 %v447, %v446
        %v458 = vpack.c.bf16 %v449, %v448
        %v459 = vpack.c.bf16 %v451, %v450
        %v460 = vld [vmem:[%s376] sm:$0xf]
        %v461 = vld [vmem:[%s376 + $0x4] sm:$0xf]
        %v462 = vld [vmem:[%s376 + $0x8] sm:$0xf]
        %v463 = vld [vmem:[%s376 + $0xc] sm:$0xf]
        %v464 = vld [vmem:[%s376 + $0x10] sm:$0xf]
        %v465 = vld [vmem:[%s376 + $0x14] sm:$0xf]
        %v466 = vld [vmem:[%s376 + $0x18] sm:$0xf]
        %v467 = vld [vmem:[%s376 + $0x1c] sm:$0xf]
        %v468 = vld [vmem:[%s376 + $0x20] sm:$0xf]
        %v469 = vld [vmem:[%s376 + $0x24] sm:$0xf]
        %v470 = vld [vmem:[%s376 + $0x28] sm:$0xf]
        %v471 = vld [vmem:[%s376 + $0x2c] sm:$0xf]
        %v472 = vld [vmem:[%s376 + $0x30] sm:$0xf]
        %v473 = vld [vmem:[%s376 + $0x34] sm:$0xf]
        %v474 = vld [vmem:[%s376 + $0x38] sm:$0xf]
        %v475 = vld [vmem:[%s376 + $0x3c] sm:$0xf]
        %v476 = vld [vmem:[%s379] sm:$0x1]
        %v478 = vperm.slane %v476, 0
        %v496 = vunpack.c.l.b16 %v460
        %v497 = vunpack.c.l.b16 %v461
        %v498 = vunpack.c.l.b16 %v462
        %v499 = vunpack.c.l.b16 %v463
        %v500 = vunpack.c.l.b16 %v464
        %v501 = vunpack.c.l.b16 %v465
        %v502 = vunpack.c.l.b16 %v466
        %v503 = vunpack.c.l.b16 %v467
        %v504 = vunpack.c.l.b16 %v468
        %v505 = vunpack.c.l.b16 %v469
        %v506 = vunpack.c.l.b16 %v470
        %v507 = vunpack.c.l.b16 %v471
        %v508 = vunpack.c.l.b16 %v472
        %v509 = vunpack.c.l.b16 %v473
        %v510 = vunpack.c.l.b16 %v474
        %v511 = vunpack.c.l.b16 %v475
        %v512 = vpack.c.b16 %v497, %v496
        %v513 = vpack.c.b16 %v499, %v498
        %v514 = vpack.c.b16 %v501, %v500
        %v515 = vpack.c.b16 %v503, %v502
        %v516 = vpack.c.b16 %v505, %v504
        %v517 = vpack.c.b16 %v507, %v506
        %v518 = vpack.c.b16 %v509, %v508
        %v519 = vpack.c.b16 %v511, %v510
        %528 = vmatpush.bf16.msra.mxu0 %v519
        %529 = vmatpush.bf16.msra.mxu0 %v518
        %530 = vmatpush.bf16.msra.mxu0 %v517
        %531 = vmatpush.bf16.msra.mxu0 %v516
        %532 = vmatpush.bf16.msra.mxu0 %v515
        %533 = vmatpush.bf16.msra.mxu0 %v514
        %534 = vmatpush.bf16.msra.mxu0 %v513
        %535 = vmatpush.bf16.msra.mxu0 %v512
        %536 = vmatmul.bf16.gmra.mxu0 %v452
        %v537 = vpop.f32.mrf.mxu0
        %v538 = vadd.f32 %v478, %v537
        %v539 = vpop.f32.mrf.mxu0
        %v540 = vadd.f32 %v478, %v539
        %541 = vmatmul.bf16.gmra.mxu0 %v453
        %v542 = vpop.f32.mrf.mxu0
        %v543 = vadd.f32 %v478, %v542
        %v544 = vpop.f32.mrf.mxu0
        %v545 = vadd.f32 %v478, %v544
        %546 = vmatmul.bf16.gmra.mxu0 %v454
        %v547 = vpop.f32.mrf.mxu0
        %v548 = vadd.f32 %v478, %v547
        %v549 = vpop.f32.mrf.mxu0
        %v550 = vadd.f32 %v478, %v549
        %551 = vmatmul.bf16.gmra.mxu0 %v455
        %v552 = vpop.f32.mrf.mxu0
        %v553 = vadd.f32 %v478, %v552
        %v554 = vpop.f32.mrf.mxu0
        %v555 = vadd.f32 %v478, %v554
        %556 = vmatmul.bf16.gmra.mxu0 %v456
        %v557 = vpop.f32.mrf.mxu0
        %v558 = vadd.f32 %v478, %v557
        %v559 = vpop.f32.mrf.mxu0
        %v560 = vadd.f32 %v478, %v559
        %561 = vmatmul.bf16.gmra.mxu0 %v457
        %v562 = vpop.f32.mrf.mxu0
        %v563 = vadd.f32 %v478, %v562
        %v564 = vpop.f32.mrf.mxu0
        %v565 = vadd.f32 %v478, %v564
        %566 = vmatmul.bf16.gmra.mxu0 %v458
        %v567 = vpop.f32.mrf.mxu0
        %v568 = vadd.f32 %v478, %v567
        %v569 = vpop.f32.mrf.mxu0
        %v570 = vadd.f32 %v478, %v569
        %571 = vmatmul.bf16.gmra.mxu0 %v459
        %v572 = vpop.f32.mrf.mxu0
        %v573 = vadd.f32 %v478, %v572
        %v574 = vpop.f32.mrf.mxu0
        %v575 = vadd.f32 %v478, %v574
        %576 = vdwg.mxu0
        %v577 = vmax.f32 %v538, 0.0
        %v578 = vmax.f32 %v540, 0.0
        %v579 = vmax.f32 %v543, 0.0
        %v580 = vmax.f32 %v545, 0.0
        %v581 = vmax.f32 %v548, 0.0
        %v582 = vmax.f32 %v550, 0.0
        %v583 = vmax.f32 %v553, 0.0
        %v584 = vmax.f32 %v555, 0.0
        %v585 = vmax.f32 %v558, 0.0
        %v586 = vmax.f32 %v560, 0.0
        %v587 = vmax.f32 %v563, 0.0
        %v588 = vmax.f32 %v565, 0.0
        %v589 = vmax.f32 %v568, 0.0
        %v590 = vmax.f32 %v570, 0.0
        %v591 = vmax.f32 %v573, 0.0
        %v592 = vmax.f32 %v575, 0.0
        %v593 = vpack.c.bf16 %v577, %v577
        %v594 = vpack.c.bf16 %v578, %v578
        %v595 = vpack.c.bf16 %v579, %v579
        %v596 = vpack.c.bf16 %v580, %v580
        %v597 = vpack.c.bf16 %v581, %v581
        %v598 = vpack.c.bf16 %v582, %v582
        %v599 = vpack.c.bf16 %v583, %v583
        %v600 = vpack.c.bf16 %v584, %v584
        %v601 = vpack.c.bf16 %v585, %v585
        %v602 = vpack.c.bf16 %v586, %v586
        %v603 = vpack.c.bf16 %v587, %v587
        %v604 = vpack.c.bf16 %v588, %v588
        %v605 = vpack.c.bf16 %v589, %v589
        %v606 = vpack.c.bf16 %v590, %v590
        %v607 = vpack.c.bf16 %v591, %v591
        %v608 = vpack.c.bf16 %v592, %v592
        %v609 = vlaneseq
        %v610 = vshrl.u32 %v609, 7
        %v611 = vadd.s32 %v610, 8
        %v612 = vadd.s32 %v610, 16
        %v613 = vadd.s32 %v610, 24
        %v614 = vadd.s32 %v610, 32
        %v615 = vadd.s32 %v610, 40
        %v616 = vadd.s32 %v610, 48
        %v617 = vadd.s32 %v610, 56
        %vm618 = vcmp.lt.s32.totalorder %v610, 0
        %v619 = vsub.s32 0, %v610
        %v620 = vsel %vm618, %v619, %v610
        %v621 = vshrl.u32 %v620, 3
        %v622 = vand.u32 %v620, 7
        %v623 = vsub.s32 0, %v622
        %v624 = vsel %vm618, %v623, %v622
        %vm625 = vcmp.lt.s32.totalorder %v611, 0
        %v626 = vsub.s32 0, %v611
        %v627 = vsel %vm625, %v626, %v611
        %v628 = vshrl.u32 %v627, 3
        %v629 = vand.u32 %v627, 7
        %v630 = vsub.s32 0, %v629
        %v631 = vsel %vm625, %v630, %v629
        %vm632 = vcmp.lt.s32.totalorder %v612, 0
        %v633 = vsub.s32 0, %v612
        %v634 = vsel %vm632, %v633, %v612
        %v635 = vshrl.u32 %v634, 3
        %v636 = vand.u32 %v634, 7
        %v637 = vsub.s32 0, %v636
        %v638 = vsel %vm632, %v637, %v636
        %vm639 = vcmp.lt.s32.totalorder %v613, 0
        %v640 = vsub.s32 0, %v613
        %v641 = vsel %vm639, %v640, %v613
        %v642 = vshrl.u32 %v641, 3
        %v643 = vand.u32 %v641, 7
        %v644 = vsub.s32 0, %v643
        %v645 = vsel %vm639, %v644, %v643
        %vm646 = vcmp.lt.s32.totalorder %v614, 0
        %v647 = vsub.s32 0, %v614
        %v648 = vsel %vm646, %v647, %v614
        %v649 = vshrl.u32 %v648, 3
        %v650 = vand.u32 %v648, 7
        %v651 = vsub.s32 0, %v650
        %v652 = vsel %vm646, %v651, %v650
        %vm653 = vcmp.lt.s32.totalorder %v615, 0
        %v654 = vsub.s32 0, %v615
        %v655 = vsel %vm653, %v654, %v615
        %v656 = vshrl.u32 %v655, 3
        %v657 = vand.u32 %v655, 7
        %v658 = vsub.s32 0, %v657
        %v659 = vsel %vm653, %v658, %v657
        %vm660 = vcmp.lt.s32.totalorder %v616, 0
        %v661 = vsub.s32 0, %v616
        %v662 = vsel %vm660, %v661, %v616
        %v663 = vshrl.u32 %v662, 3
        %v664 = vand.u32 %v662, 7
        %v665 = vsub.s32 0, %v664
        %v666 = vsel %vm660, %v665, %v664
        %vm667 = vcmp.lt.s32.totalorder %v617, 0
        %v668 = vsub.s32 0, %v617
        %v669 = vsel %vm667, %v668, %v617
        %v670 = vshrl.u32 %v669, 3
        %v671 = vand.u32 %v669, 7
        %v672 = vsub.s32 0, %v671
        %v673 = vsel %vm667, %v672, %v671
        %vm674 = vcmp.ne.s32.totalorder %v624, 0
        %vm675 = vcmp.ne.s32.totalorder %v631, 0
        %vm676 = vcmp.ne.s32.totalorder %v638, 0
        %vm677 = vcmp.ne.s32.totalorder %v645, 0
        %vm678 = vcmp.ne.s32.totalorder %v652, 0
        %vm679 = vcmp.ne.s32.totalorder %v659, 0
        %vm680 = vcmp.ne.s32.totalorder %v666, 0
        %vm681 = vcmp.ne.s32.totalorder %v673, 0
        %vm682 = vcmp.lt.s32.totalorder %v624, 0
        %vm683 = vcmp.lt.s32.totalorder %v631, 0
        %vm684 = vcmp.lt.s32.totalorder %v638, 0
        %vm685 = vcmp.lt.s32.totalorder %v645, 0
        %vm686 = vcmp.lt.s32.totalorder %v652, 0
        %vm687 = vcmp.lt.s32.totalorder %v659, 0
        %vm688 = vcmp.lt.s32.totalorder %v666, 0
        %vm689 = vcmp.lt.s32.totalorder %v673, 0
        %vm690 = vmand %vm682, %vm674
        %vm691 = vmand %vm683, %vm675
        %vm692 = vmand %vm684, %vm676
        %vm693 = vmand %vm685, %vm677
        %vm694 = vmand %vm686, %vm678
        %vm695 = vmand %vm687, %vm679
        %vm696 = vmand %vm688, %vm680
        %vm697 = vmand %vm689, %vm681
        %v698 = vadd.s32 %v624, 8
        %v699 = vadd.s32 %v631, 8
        %v700 = vadd.s32 %v638, 8
        %v701 = vadd.s32 %v645, 8
        %v702 = vadd.s32 %v652, 8
        %v703 = vadd.s32 %v659, 8
        %v704 = vadd.s32 %v666, 8
        %v705 = vadd.s32 %v673, 8
        %v706 = vsel %vm690, %v698, %v624
        %v707 = vsel %vm691, %v699, %v631
        %v708 = vsel %vm692, %v700, %v638
        %v709 = vsel %vm693, %v701, %v645
        %v710 = vsel %vm694, %v702, %v652
        %v711 = vsel %vm695, %v703, %v659
        %v712 = vsel %vm696, %v704, %v666
        %v713 = vsel %vm697, %v705, %v673
        %vm714 = vcmp.ge.s32.totalorder %v706, 1
        %vm715 = vcmp.ge.s32.totalorder %v707, 1
        %vm716 = vcmp.ge.s32.totalorder %v708, 1
        %vm717 = vcmp.ge.s32.totalorder %v709, 1
        %vm718 = vcmp.ge.s32.totalorder %v710, 1
        %vm719 = vcmp.ge.s32.totalorder %v711, 1
        %vm720 = vcmp.ge.s32.totalorder %v712, 1
        %vm721 = vcmp.ge.s32.totalorder %v713, 1
        %vm722 = vcmp.le.s32.totalorder %v706, 6
        %vm723 = vcmp.le.s32.totalorder %v707, 6
        %vm724 = vcmp.le.s32.totalorder %v708, 6
        %vm725 = vcmp.le.s32.totalorder %v709, 6
        %vm726 = vcmp.le.s32.totalorder %v710, 6
        %vm727 = vcmp.le.s32.totalorder %v711, 6
        %vm728 = vcmp.le.s32.totalorder %v712, 6
        %vm729 = vcmp.le.s32.totalorder %v713, 6
        %v744 = vunpack.c.l.b16 %v593
        %v745 = vunpack.c.l.b16 %v594
        %v746 = vunpack.c.l.b16 %v595
        %v747 = vunpack.c.l.b16 %v596
        %v748 = vunpack.c.l.b16 %v597
        %v749 = vunpack.c.l.b16 %v598
        %v750 = vunpack.c.l.b16 %v599
        %v751 = vunpack.c.l.b16 %v601
        %v752 = vunpack.c.l.b16 %v602
        %v753 = vunpack.c.l.b16 %v603
        %v754 = vunpack.c.l.b16 %v604
        %v755 = vunpack.c.l.b16 %v605
        %v756 = vunpack.c.l.b16 %v606
        %v757 = vunpack.c.l.b16 %v607
        %v758 = vpack.c.b16 %v744, %v744
        %v759 = vpack.c.b16 %v746, %v745
        %v760 = vpack.c.b16 %v748, %v747
        %v761 = vpack.c.b16 %v750, %v749
        %v762 = vpack.c.b16 %v751, %v751
        %v763 = vpack.c.b16 %v753, %v752
        %v764 = vpack.c.b16 %v755, %v754
        %v765 = vpack.c.b16 %v757, %v756
        %vm766 = vcmask 1043456
        %v769 = vsel %vm766, 0, %v758
        %v771 = vsel %vm766, 0, %v762
        %vm772 = vsmask.f32 256
        %v773 = vshrl.u32 %v769, 16
        %v775 = vrot.slane %v773, 7
        %v776 = vshll.u32 %v769, 16
        %v778 = vor.u32 %v775, %v776
        %v780 = vshrl.u32 %v759, 16
        %v782 = vrot.slane %v780, 7
        %v783 = vshll.u32 %v759, 16
        %v785 = vor.u32 %v782, %v783
        %v786 = vsel %vm772, %v775, %v785
        %v788 = vshrl.u32 %v760, 16
        %v790 = vrot.slane %v788, 7
        %v791 = vshll.u32 %v760, 16
        %v793 = vor.u32 %v790, %v791
        %v794 = vsel %vm772, %v782, %v793
        %v796 = vshrl.u32 %v761, 16
        %v798 = vrot.slane %v796, 7
        %v799 = vshll.u32 %v761, 16
        %v801 = vor.u32 %v798, %v799
        %v802 = vsel %vm772, %v790, %v801
        %v803 = vshrl.u32 %v771, 16
        %v805 = vrot.slane %v803, 7
        %v806 = vshll.u32 %v771, 16
        %v808 = vor.u32 %v805, %v806
        %v810 = vshrl.u32 %v763, 16
        %v812 = vrot.slane %v810, 7
        %v813 = vshll.u32 %v763, 16
        %v815 = vor.u32 %v812, %v813
        %v816 = vsel %vm772, %v805, %v815
        %v818 = vshrl.u32 %v764, 16
        %v820 = vrot.slane %v818, 7
        %v821 = vshll.u32 %v764, 16
        %v823 = vor.u32 %v820, %v821
        %v824 = vsel %vm772, %v812, %v823
        %v826 = vshrl.u32 %v765, 16
        %v828 = vrot.slane %v826, 7
        %v829 = vshll.u32 %v765, 16
        %v831 = vor.u32 %v828, %v829
        %v832 = vsel %vm772, %v820, %v831
        %vm841 = vcmask 1040384
        %vm842 = vmand %vm841, %vm772
        %v843 = vsel %vm842, 0, %v778
        %v844 = vsel %vm842, 0, %v808
        %v845 = vsel %vm714, 1, 0
        %v846 = vsel %vm715, 1, 0
        %v847 = vsel %vm716, 1, 0
        %v848 = vsel %vm717, 1, 0
        %v849 = vsel %vm718, 1, 0
        %v850 = vsel %vm719, 1, 0
        %v851 = vsel %vm720, 1, 0
        %v852 = vsel %vm721, 1, 0
        %vm853 = vcmp.eq.s32.totalorder %v845, 1
        %vm854 = vcmp.eq.s32.totalorder %v846, 1
        %vm855 = vcmp.eq.s32.totalorder %v847, 1
        %vm856 = vcmp.eq.s32.totalorder %v848, 1
        %vm857 = vcmp.eq.s32.totalorder %v849, 1
        %vm858 = vcmp.eq.s32.totalorder %v850, 1
        %vm859 = vcmp.eq.s32.totalorder %v851, 1
        %vm860 = vcmp.eq.s32.totalorder %v852, 1
        %vm861 = vmpackc.low %vm853, %vm853
        %vm862 = vmpackc.low %vm854, %vm854
        %vm863 = vmpackc.low %vm855, %vm855
        %vm864 = vmpackc.low %vm856, %vm856
        %vm865 = vmpackc.low %vm857, %vm857
        %vm866 = vmpackc.low %vm858, %vm858
        %vm867 = vmpackc.low %vm859, %vm859
        %vm868 = vmpackc.low %vm860, %vm860
        %v869 = vsel %vm861, 65537, 0
        %v870 = vsel %vm862, 65537, 0
        %v871 = vsel %vm863, 65537, 0
        %v872 = vsel %vm864, 65537, 0
        %v873 = vsel %vm865, 65537, 0
        %v874 = vsel %vm866, 65537, 0
        %v875 = vsel %vm867, 65537, 0
        %v876 = vsel %vm868, 65537, 0
        %v877 = vunpack.c.l.b16 %v869
        %v878 = vunpack.c.l.b16 %v870
        %v879 = vunpack.c.l.b16 %v871
        %v880 = vunpack.c.l.b16 %v872
        %v881 = vunpack.c.l.b16 %v873
        %v882 = vunpack.c.l.b16 %v874
        %v883 = vunpack.c.l.b16 %v875
        %v884 = vunpack.c.l.b16 %v876
        %v885 = vpack.c.b16 %v878, %v877
        %v886 = vpack.c.b16 %v880, %v879
        %v887 = vpack.c.b16 %v882, %v881
        %v888 = vpack.c.b16 %v884, %v883
        %v889 = vunpack.c.l.b16 %v885
        %v890 = vunpack.c.h.b16 %v885
        %v891 = vunpack.c.l.b16 0
        %v892 = vunpack.c.h.b16 0
        %vm893 = vcmp.ne.s32.totalorder %v889, %v891
        %vm894 = vcmp.ne.s32.totalorder %v890, %v892
        %vm895 = vmpackc.low %vm894, %vm893
        %v896 = vunpack.c.l.b16 %v886
        %v897 = vunpack.c.h.b16 %v886
        %v898 = vunpack.c.l.b16 0
        %v899 = vunpack.c.h.b16 0
        %vm900 = vcmp.ne.s32.totalorder %v896, %v898
        %vm901 = vcmp.ne.s32.totalorder %v897, %v899
        %vm902 = vmpackc.low %vm901, %vm900
        %v903 = vunpack.c.l.b16 %v887
        %v904 = vunpack.c.h.b16 %v887
        %v905 = vunpack.c.l.b16 0
        %v906 = vunpack.c.h.b16 0
        %vm907 = vcmp.ne.s32.totalorder %v903, %v905
        %vm908 = vcmp.ne.s32.totalorder %v904, %v906
        %vm909 = vmpackc.low %vm908, %vm907
        %v910 = vunpack.c.l.b16 %v888
        %v911 = vunpack.c.h.b16 %v888
        %v912 = vunpack.c.l.b16 0
        %v913 = vunpack.c.h.b16 0
        %vm914 = vcmp.ne.s32.totalorder %v910, %v912
        %vm915 = vcmp.ne.s32.totalorder %v911, %v913
        %vm916 = vmpackc.low %vm915, %vm914
        %v917 = vsel %vm895, %v843, 0
        %v918 = vsel %vm902, %v786, 0
        %v919 = vsel %vm909, %v794, 0
        %v920 = vsel %vm916, %v802, 0
        %v921 = vsel %vm895, %v844, 0
        %v922 = vsel %vm902, %v816, 0
        %v923 = vsel %vm909, %v824, 0
        %v924 = vsel %vm916, %v832, 0
        %vm925 = vsmask.f32 7424
        %v926 = vrot.slane %v776, 1
        %v927 = vor.u32 %v773, %v926
        %v928 = vrot.slane %v783, 1
        %v929 = vsel %vm925, %v927, %v928
        %v930 = vor.u32 %v780, %v928
        %v931 = vrot.slane %v791, 1
        %v932 = vsel %vm925, %v930, %v931
        %v933 = vor.u32 %v788, %v931
        %v934 = vrot.slane %v799, 1
        %v935 = vsel %vm925, %v933, %v934
        %v936 = vor.u32 %v796, %v934
        %v937 = vrot.slane %v806, 1
        %v938 = vor.u32 %v803, %v937
        %v939 = vrot.slane %v813, 1
        %v940 = vsel %vm925, %v938, %v939
        %v941 = vor.u32 %v810, %v939
        %v942 = vrot.slane %v821, 1
        %v943 = vsel %vm925, %v941, %v942
        %v944 = vor.u32 %v818, %v942
        %v945 = vrot.slane %v829, 1
        %v946 = vsel %vm925, %v944, %v945
        %v947 = vor.u32 %v826, %v945
        %vm956 = vcmask 1047552
        %vm957 = vmand %vm956, %vm925
        %v958 = vsel %vm957, %v936, 0
        %v959 = vsel %vm957, %v947, 0
        %v960 = vsel %vm722, 1, 0
        %v961 = vsel %vm723, 1, 0
        %v962 = vsel %vm724, 1, 0
        %v963 = vsel %vm725, 1, 0
        %v964 = vsel %vm726, 1, 0
        %v965 = vsel %vm727, 1, 0
        %v966 = vsel %vm728, 1, 0
        %v967 = vsel %vm729, 1, 0
        %vm968 = vcmp.eq.s32.totalorder %v960, 1
        %vm969 = vcmp.eq.s32.totalorder %v961, 1
        %vm970 = vcmp.eq.s32.totalorder %v962, 1
        %vm971 = vcmp.eq.s32.totalorder %v963, 1
        %vm972 = vcmp.eq.s32.totalorder %v964, 1
        %vm973 = vcmp.eq.s32.totalorder %v965, 1
        %vm974 = vcmp.eq.s32.totalorder %v966, 1
        %vm975 = vcmp.eq.s32.totalorder %v967, 1
        %vm976 = vmpackc.low %vm968, %vm968
        %vm977 = vmpackc.low %vm969, %vm969
        %vm978 = vmpackc.low %vm970, %vm970
        %vm979 = vmpackc.low %vm971, %vm971
        %vm980 = vmpackc.low %vm972, %vm972
        %vm981 = vmpackc.low %vm973, %vm973
        %vm982 = vmpackc.low %vm974, %vm974
        %vm983 = vmpackc.low %vm975, %vm975
        %v984 = vsel %vm976, 65537, 0
        %v985 = vsel %vm977, 65537, 0
        %v986 = vsel %vm978, 65537, 0
        %v987 = vsel %vm979, 65537, 0
        %v988 = vsel %vm980, 65537, 0
        %v989 = vsel %vm981, 65537, 0
        %v990 = vsel %vm982, 65537, 0
        %v991 = vsel %vm983, 65537, 0
        %v992 = vunpack.c.l.b16 %v984
        %v993 = vunpack.c.l.b16 %v985
        %v994 = vunpack.c.l.b16 %v986
        %v995 = vunpack.c.l.b16 %v987
        %v996 = vunpack.c.l.b16 %v988
        %v997 = vunpack.c.l.b16 %v989
        %v998 = vunpack.c.l.b16 %v990
        %v999 = vunpack.c.l.b16 %v991
        %v1000 = vpack.c.b16 %v993, %v992
        %v1001 = vpack.c.b16 %v995, %v994
        %v1002 = vpack.c.b16 %v997, %v996
        %v1003 = vpack.c.b16 %v999, %v998
        %v1004 = vunpack.c.l.b16 %v1000
        %v1005 = vunpack.c.h.b16 %v1000
        %v1006 = vunpack.c.l.b16 0
        %v1007 = vunpack.c.h.b16 0
        %vm1008 = vcmp.ne.s32.totalorder %v1004, %v1006
        %vm1009 = vcmp.ne.s32.totalorder %v1005, %v1007
        %vm1010 = vmpackc.low %vm1009, %vm1008
        %v1011 = vunpack.c.l.b16 %v1001
        %v1012 = vunpack.c.h.b16 %v1001
        %v1013 = vunpack.c.l.b16 0
        %v1014 = vunpack.c.h.b16 0
        %vm1015 = vcmp.ne.s32.totalorder %v1011, %v1013
        %vm1016 = vcmp.ne.s32.totalorder %v1012, %v1014
        %vm1017 = vmpackc.low %vm1016, %vm1015
        %v1018 = vunpack.c.l.b16 %v1002
        %v1019 = vunpack.c.h.b16 %v1002
        %v1020 = vunpack.c.l.b16 0
        %v1021 = vunpack.c.h.b16 0
        %vm1022 = vcmp.ne.s32.totalorder %v1018, %v1020
        %vm1023 = vcmp.ne.s32.totalorder %v1019, %v1021
        %vm1024 = vmpackc.low %vm1023, %vm1022
        %v1025 = vunpack.c.l.b16 %v1003
        %v1026 = vunpack.c.h.b16 %v1003
        %v1027 = vunpack.c.l.b16 0
        %v1028 = vunpack.c.h.b16 0
        %vm1029 = vcmp.ne.s32.totalorder %v1025, %v1027
        %vm1030 = vcmp.ne.s32.totalorder %v1026, %v1028
        %vm1031 = vmpackc.low %vm1030, %vm1029
        %v1032 = vsel %vm1010, %v929, 0
        %v1033 = vsel %vm1017, %v932, 0
        %v1034 = vsel %vm1024, %v935, 0
        %v1035 = vsel %vm1031, %v958, 0
        %v1036 = vsel %vm1010, %v940, 0
        %v1037 = vsel %vm1017, %v943, 0
        %v1038 = vsel %vm1024, %v946, 0
        %v1039 = vsel %vm1031, %v959, 0
        %v1042 = vunpack.c.l.b16 %v600
        %v1043 = vunpack.c.l.b16 %v608
        %v1044 = vpack.c.b16 %v745, %v744
        %v1045 = vpack.c.b16 %v747, %v746
        %v1046 = vpack.c.b16 %v749, %v748
        %v1047 = vpack.c.b16 %v1042, %v750
        %v1048 = vpack.c.b16 %v752, %v751
        %v1049 = vpack.c.b16 %v754, %v753
        %v1050 = vpack.c.b16 %v756, %v755
        %v1051 = vpack.c.b16 %v1043, %v757
        %v1053 = vshrl.u32 %v1044, 16
        %v1055 = vrot.slane %v1053, 7
        %v1056 = vshll.u32 %v1044, 16
        %v1058 = vor.u32 %v1055, %v1056
        %v1060 = vshrl.u32 %v1045, 16
        %v1062 = vrot.slane %v1060, 7
        %v1063 = vshll.u32 %v1045, 16
        %v1065 = vor.u32 %v1062, %v1063
        %v1066 = vsel %vm772, %v1055, %v1065
        %v1068 = vshrl.u32 %v1046, 16
        %v1070 = vrot.slane %v1068, 7
        %v1071 = vshll.u32 %v1046, 16
        %v1073 = vor.u32 %v1070, %v1071
        %v1074 = vsel %vm772, %v1062, %v1073
        %v1076 = vshrl.u32 %v1047, 16
        %v1078 = vrot.slane %v1076, 7
        %v1079 = vshll.u32 %v1047, 16
        %v1081 = vor.u32 %v1078, %v1079
        %v1082 = vsel %vm772, %v1070, %v1081
        %v1084 = vshrl.u32 %v1048, 16
        %v1086 = vrot.slane %v1084, 7
        %v1087 = vshll.u32 %v1048, 16
        %v1089 = vor.u32 %v1086, %v1087
        %v1091 = vshrl.u32 %v1049, 16
        %v1093 = vrot.slane %v1091, 7
        %v1094 = vshll.u32 %v1049, 16
        %v1096 = vor.u32 %v1093, %v1094
        %v1097 = vsel %vm772, %v1086, %v1096
        %v1099 = vshrl.u32 %v1050, 16
        %v1101 = vrot.slane %v1099, 7
        %v1102 = vshll.u32 %v1050, 16
        %v1104 = vor.u32 %v1101, %v1102
        %v1105 = vsel %vm772, %v1093, %v1104
        %v1107 = vshrl.u32 %v1051, 16
        %v1109 = vrot.slane %v1107, 7
        %v1110 = vshll.u32 %v1051, 16
        %v1112 = vor.u32 %v1109, %v1110
        %v1113 = vsel %vm772, %v1101, %v1112
        %v1122 = vsel %vm842, 0, %v1058
        %v1123 = vsel %vm842, 0, %v1089
        %v1124 = vsel %vm895, %v1122, 0
        %v1125 = vsel %vm902, %v1066, 0
        %v1126 = vsel %vm909, %v1074, 0
        %v1127 = vsel %vm916, %v1082, 0
        %v1128 = vsel %vm895, %v1123, 0
        %v1129 = vsel %vm902, %v1097, 0
        %v1130 = vsel %vm909, %v1105, 0
        %v1131 = vsel %vm916, %v1113, 0
        %v1132 = vrot.slane %v1056, 1
        %v1133 = vor.u32 %v1053, %v1132
        %v1134 = vrot.slane %v1063, 1
        %v1135 = vsel %vm925, %v1133, %v1134
        %v1136 = vor.u32 %v1060, %v1134
        %v1137 = vrot.slane %v1071, 1
        %v1138 = vsel %vm925, %v1136, %v1137
        %v1139 = vor.u32 %v1068, %v1137
        %v1140 = vrot.slane %v1079, 1
        %v1141 = vsel %vm925, %v1139, %v1140
        %v1142 = vor.u32 %v1076, %v1140
        %v1143 = vrot.slane %v1087, 1
        %v1144 = vor.u32 %v1084, %v1143
        %v1145 = vrot.slane %v1094, 1
        %v1146 = vsel %vm925, %v1144, %v1145
        %v1147 = vor.u32 %v1091, %v1145
        %v1148 = vrot.slane %v1102, 1
        %v1149 = vsel %vm925, %v1147, %v1148
        %v1150 = vor.u32 %v1099, %v1148
        %v1151 = vrot.slane %v1110, 1
        %v1152 = vsel %vm925, %v1150, %v1151
        %v1153 = vor.u32 %v1107, %v1151
        %v1162 = vsel %vm957, %v1142, 0
        %v1163 = vsel %vm957, %v1153, 0
        %v1164 = vsel %vm1010, %v1135, 0
        %v1165 = vsel %vm1017, %v1138, 0
        %v1166 = vsel %vm1024, %v1141, 0
        %v1167 = vsel %vm1031, %v1162, 0
        %v1168 = vsel %vm1010, %v1146, 0
        %v1169 = vsel %vm1017, %v1149, 0
        %v1170 = vsel %vm1024, %v1152, 0
        %v1171 = vsel %vm1031, %v1163, 0
        %v1172 = vpack.c.b16 %v1042, %v1042
        %v1173 = vpack.c.b16 %v1043, %v1043
        %v1175 = vsel %vm766, %v1172, 0
        %v1177 = vsel %vm766, %v1173, 0
        %v1178 = vshrl.u32 %v1175, 16
        %v1180 = vrot.slane %v1178, 7
        %v1181 = vshll.u32 %v1175, 16
        %v1183 = vor.u32 %v1180, %v1181
        %v1184 = vsel %vm772, %v798, %v1183
        %v1185 = vshrl.u32 %v1177, 16
        %v1187 = vrot.slane %v1185, 7
        %v1188 = vshll.u32 %v1177, 16
        %v1190 = vor.u32 %v1187, %v1188
        %v1191 = vsel %vm772, %v828, %v1190
        %v1196 = vsel %vm842, 0, %v785
        %v1197 = vsel %vm842, 0, %v815
        %v1198 = vsel %vm895, %v1196, 0
        %v1199 = vsel %vm902, %v794, 0
        %v1200 = vsel %vm909, %v802, 0
        %v1201 = vsel %vm916, %v1184, 0
        %v1202 = vsel %vm895, %v1197, 0
        %v1203 = vsel %vm902, %v824, 0
        %v1204 = vsel %vm909, %v832, 0
        %v1205 = vsel %vm916, %v1191, 0
        %v1206 = vrot.slane %v1181, 1
        %v1207 = vsel %vm925, %v936, %v1206
        %v1208 = vor.u32 %v1178, %v1206
        %v1209 = vrot.slane %v1188, 1
        %v1210 = vsel %vm925, %v947, %v1209
        %v1211 = vor.u32 %v1185, %v1209
        %v1216 = vsel %vm957, %v1208, 0
        %v1217 = vsel %vm957, %v1211, 0
        %v1218 = vsel %vm1010, %v932, 0
        %v1219 = vsel %vm1017, %v935, 0
        %v1220 = vsel %vm1024, %v1207, 0
        %v1221 = vsel %vm1031, %v1216, 0
        %v1222 = vsel %vm1010, %v943, 0
        %v1223 = vsel %vm1017, %v946, 0
        %v1224 = vsel %vm1024, %v1210, 0
        %v1225 = vsel %vm1031, %v1217, 0
        %1228 = vrot.lane.b32.xlu0 %v769, 32
        %v1229 = vpop.permute.xlu0 %1228
        %1230 = vrot.lane.b32.xlu0 %v759, 32
        %v1231 = vpop.permute.xlu0 %1230
        %1232 = vrot.lane.b32.xlu0 %v760, 32
        %v1233 = vpop.permute.xlu0 %1232
        %1234 = vrot.lane.b32.xlu0 %v761, 32
        %v1235 = vpop.permute.xlu0 %1234
        %1236 = vrot.lane.b32.xlu0 %v771, 32
        %v1237 = vpop.permute.xlu0 %1236
        %1238 = vrot.lane.b32.xlu0 %v763, 32
        %v1239 = vpop.permute.xlu0 %1238
        %1240 = vrot.lane.b32.xlu0 %v764, 32
        %v1241 = vpop.permute.xlu0 %1240
        %1242 = vrot.lane.b32.xlu0 %v765, 32
        %v1243 = vpop.permute.xlu0 %1242
        %1252 = vrot.lane.b32.xlu0 %v1032, 64
        %v1253 = vpop.permute.xlu0 %1252
        %1254 = vrot.lane.b32.xlu0 %v1033, 64
        %v1255 = vpop.permute.xlu0 %1254
        %1256 = vrot.lane.b32.xlu0 %v1034, 64
        %v1257 = vpop.permute.xlu0 %1256
        %1258 = vrot.lane.b32.xlu0 %v1035, 64
        %v1259 = vpop.permute.xlu0 %1258
        %1260 = vrot.lane.b32.xlu0 %v1036, 64
        %v1261 = vpop.permute.xlu0 %1260
        %1262 = vrot.lane.b32.xlu0 %v1037, 64
        %v1263 = vpop.permute.xlu0 %1262
        %1264 = vrot.lane.b32.xlu0 %v1038, 64
        %v1265 = vpop.permute.xlu0 %1264
        %1266 = vrot.lane.b32.xlu0 %v1039, 64
        %v1267 = vpop.permute.xlu0 %1266
        %1276 = vrot.lane.b32.xlu0 %v1124, 96
        %v1277 = vpop.permute.xlu0 %1276
        %1278 = vrot.lane.b32.xlu0 %v1125, 96
        %v1279 = vpop.permute.xlu0 %1278
        %1280 = vrot.lane.b32.xlu0 %v1126, 96
        %v1281 = vpop.permute.xlu0 %1280
        %1282 = vrot.lane.b32.xlu0 %v1127, 96
        %v1283 = vpop.permute.xlu0 %1282
        %1284 = vrot.lane.b32.xlu0 %v1128, 96
        %v1285 = vpop.permute.xlu0 %1284
        %1286 = vrot.lane.b32.xlu0 %v1129, 96
        %v1287 = vpop.permute.xlu0 %1286
        %1288 = vrot.lane.b32.xlu0 %v1130, 96
        %v1289 = vpop.permute.xlu0 %1288
        %1290 = vrot.lane.b32.xlu0 %v1131, 96
        %v1291 = vpop.permute.xlu0 %1290
        %1300 = vrot.lane.b32.xlu0 %v1164, 32
        %v1301 = vpop.permute.xlu0 %1300
        %1302 = vrot.lane.b32.xlu0 %v1165, 32
        %v1303 = vpop.permute.xlu0 %1302
        %1304 = vrot.lane.b32.xlu0 %v1166, 32
        %v1305 = vpop.permute.xlu0 %1304
        %1306 = vrot.lane.b32.xlu0 %v1167, 32
        %v1307 = vpop.permute.xlu0 %1306
        %1308 = vrot.lane.b32.xlu0 %v1168, 32
        %v1309 = vpop.permute.xlu0 %1308
        %1310 = vrot.lane.b32.xlu0 %v1169, 32
        %v1311 = vpop.permute.xlu0 %1310
        %1312 = vrot.lane.b32.xlu0 %v1170, 32
        %v1313 = vpop.permute.xlu0 %1312
        %1314 = vrot.lane.b32.xlu0 %v1171, 32
        %v1315 = vpop.permute.xlu0 %1314
        %1324 = vrot.lane.b32.xlu0 %v1198, 64
        %v1325 = vpop.permute.xlu0 %1324
        %1326 = vrot.lane.b32.xlu0 %v1199, 64
        %v1327 = vpop.permute.xlu0 %1326
        %1328 = vrot.lane.b32.xlu0 %v1200, 64
        %v1329 = vpop.permute.xlu0 %1328
        %1330 = vrot.lane.b32.xlu0 %v1201, 64
        %v1331 = vpop.permute.xlu0 %1330
        %1332 = vrot.lane.b32.xlu0 %v1202, 64
        %v1333 = vpop.permute.xlu0 %1332
        %1334 = vrot.lane.b32.xlu0 %v1203, 64
        %v1335 = vpop.permute.xlu0 %1334
        %1336 = vrot.lane.b32.xlu0 %v1204, 64
        %v1337 = vpop.permute.xlu0 %1336
        %1338 = vrot.lane.b32.xlu0 %v1205, 64
        %v1339 = vpop.permute.xlu0 %1338
        %1342 = vrot.lane.b32.xlu0 %v759, 96
        %v1343 = vpop.permute.xlu0 %1342
        %1344 = vrot.lane.b32.xlu0 %v760, 96
        %v1345 = vpop.permute.xlu0 %1344
        %1346 = vrot.lane.b32.xlu0 %v761, 96
        %v1347 = vpop.permute.xlu0 %1346
        %1348 = vrot.lane.b32.xlu0 %v1175, 96
        %v1349 = vpop.permute.xlu0 %1348
        %1350 = vrot.lane.b32.xlu0 %v763, 96
        %v1351 = vpop.permute.xlu0 %1350
        %1352 = vrot.lane.b32.xlu0 %v764, 96
        %v1353 = vpop.permute.xlu0 %1352
        %1354 = vrot.lane.b32.xlu0 %v765, 96
        %v1355 = vpop.permute.xlu0 %1354
        %1356 = vrot.lane.b32.xlu0 %v1177, 96
        %v1357 = vpop.permute.xlu0 %1356
        %vm1358 = vcmask 261120
        %v1361 = vsel %vm1358, %v917, %v1229
        %v1364 = vsel %vm1358, %v918, %v1231
        %v1367 = vsel %vm1358, %v919, %v1233
        %v1370 = vsel %vm1358, %v920, %v1235
        %v1373 = vsel %vm1358, %v921, %v1237
        %v1376 = vsel %vm1358, %v922, %v1239
        %v1379 = vsel %vm1358, %v923, %v1241
        %v1382 = vsel %vm1358, %v924, %v1243
        %vm1383 = vcmask 523264
        %v1385 = vsel %vm1383, %v1361, %v1253
        %v1387 = vsel %vm1383, %v1364, %v1255
        %v1389 = vsel %vm1383, %v1367, %v1257
        %v1391 = vsel %vm1383, %v1370, %v1259
        %v1393 = vsel %vm1383, %v1373, %v1261
        %v1395 = vsel %vm1383, %v1376, %v1263
        %v1397 = vsel %vm1383, %v1379, %v1265
        %v1399 = vsel %vm1383, %v1382, %v1267
        %vm1400 = vcmask 785408
        %v1402 = vsel %vm1400, %v1385, %v1277
        %v1405 = vsel %vm1400, %v1387, %v1279
        %v1408 = vsel %vm1400, %v1389, %v1281
        %v1411 = vsel %vm1400, %v1391, %v1283
        %v1414 = vsel %vm1400, %v1393, %v1285
        %v1417 = vsel %vm1400, %v1395, %v1287
        %v1420 = vsel %vm1400, %v1397, %v1289
        %v1423 = vsel %vm1400, %v1399, %v1291
        %v1426 = vsel %vm1358, %v1044, %v1301
        %v1428 = vsel %vm1358, %v1045, %v1303
        %v1430 = vsel %vm1358, %v1046, %v1305
        %v1432 = vsel %vm1358, %v1047, %v1307
        %v1434 = vsel %vm1358, %v1048, %v1309
        %v1436 = vsel %vm1358, %v1049, %v1311
        %v1438 = vsel %vm1358, %v1050, %v1313
        %v1440 = vsel %vm1358, %v1051, %v1315
        %v1442 = vsel %vm1383, %v1426, %v1325
        %v1444 = vsel %vm1383, %v1428, %v1327
        %v1446 = vsel %vm1383, %v1430, %v1329
        %v1448 = vsel %vm1383, %v1432, %v1331
        %v1450 = vsel %vm1383, %v1434, %v1333
        %v1452 = vsel %vm1383, %v1436, %v1335
        %v1454 = vsel %vm1383, %v1438, %v1337
        %v1456 = vsel %vm1383, %v1440, %v1339
        %v1458 = vsel %vm1400, %v1442, %v1343
        %v1461 = vsel %vm1400, %v1444, %v1345
        %v1464 = vsel %vm1400, %v1446, %v1347
        %v1467 = vsel %vm1400, %v1448, %v1349
        %v1470 = vsel %vm1400, %v1450, %v1351
        %v1473 = vsel %vm1400, %v1452, %v1353
        %v1476 = vsel %vm1400, %v1454, %v1355
        %v1479 = vsel %vm1400, %v1456, %v1357
        %v1481 = vld [vmem:[%s384] sm:$0xf]
        %v1482 = vld [vmem:[%s384 + $0x4] sm:$0xf]
        %v1483 = vld [vmem:[%s384 + $0x8] sm:$0xf]
        %v1484 = vld [vmem:[%s384 + $0xc] sm:$0xf]
        %v1485 = vld [vmem:[%s384 + $0x10] sm:$0xf]
        %v1486 = vld [vmem:[%s384 + $0x14] sm:$0xf]
        %v1487 = vld [vmem:[%s384 + $0x18] sm:$0xf]
        %v1488 = vld [vmem:[%s384 + $0x1c] sm:$0xf]
        %v1489 = vld [vmem:[%s384 + $0x20] sm:$0xf]
        %v1490 = vld [vmem:[%s384 + $0x24] sm:$0xf]
        %v1491 = vld [vmem:[%s384 + $0x28] sm:$0xf]
        %v1492 = vld [vmem:[%s384 + $0x2c] sm:$0xf]
        %v1493 = vld [vmem:[%s384 + $0x30] sm:$0xf]
        %v1494 = vld [vmem:[%s384 + $0x34] sm:$0xf]
        %v1495 = vld [vmem:[%s384 + $0x38] sm:$0xf]
        %v1496 = vld [vmem:[%s384 + $0x3c] sm:$0xf]
        %v1497 = vld [vmem:[%s384 + $0x40] sm:$0xf]
        %v1498 = vld [vmem:[%s384 + $0x44] sm:$0xf]
        %v1499 = vld [vmem:[%s384 + $0x48] sm:$0xf]
        %v1500 = vld [vmem:[%s384 + $0x4c] sm:$0xf]
        %v1501 = vld [vmem:[%s384 + $0x50] sm:$0xf]
        %v1502 = vld [vmem:[%s384 + $0x54] sm:$0xf]
        %v1503 = vld [vmem:[%s384 + $0x58] sm:$0xf]
        %v1504 = vld [vmem:[%s384 + $0x5c] sm:$0xf]
        %v1505 = vld [vmem:[%s384 + $0x60] sm:$0xf]
        %v1506 = vld [vmem:[%s384 + $0x64] sm:$0xf]
        %v1507 = vld [vmem:[%s384 + $0x68] sm:$0xf]
        %v1508 = vld [vmem:[%s384 + $0x6c] sm:$0xf]
        %v1509 = vld [vmem:[%s384 + $0x70] sm:$0xf]
        %v1510 = vld [vmem:[%s384 + $0x74] sm:$0xf]
        %v1511 = vld [vmem:[%s384 + $0x78] sm:$0xf]
        %v1512 = vld [vmem:[%s384 + $0x7c] sm:$0xf]
        %v1513 = vld [vmem:[%s384 + $0x80] sm:$0xf]
        %v1514 = vld [vmem:[%s384 + $0x84] sm:$0xf]
        %v1515 = vld [vmem:[%s384 + $0x88] sm:$0xf]
        %v1516 = vld [vmem:[%s384 + $0x8c] sm:$0xf]
        %v1517 = vld [vmem:[%s387] sm:$0x1]
        %v1519 = vperm.slane %v1517, 0
        %v1557 = vunpack.c.l.b16 %v1481
        %v1558 = vunpack.c.l.b16 %v1482
        %v1559 = vunpack.c.l.b16 %v1483
        %v1560 = vunpack.c.l.b16 %v1484
        %v1561 = vunpack.c.l.b16 %v1485
        %v1562 = vunpack.c.l.b16 %v1486
        %v1563 = vunpack.c.l.b16 %v1487
        %v1564 = vunpack.c.l.b16 %v1488
        %v1565 = vunpack.c.l.b16 %v1489
        %v1566 = vunpack.c.l.b16 %v1490
        %v1567 = vunpack.c.l.b16 %v1491
        %v1568 = vunpack.c.l.b16 %v1492
        %v1569 = vunpack.c.l.b16 %v1493
        %v1570 = vunpack.c.l.b16 %v1494
        %v1571 = vunpack.c.l.b16 %v1495
        %v1572 = vunpack.c.l.b16 %v1496
        %v1573 = vunpack.c.l.b16 %v1497
        %v1574 = vunpack.c.l.b16 %v1498
        %v1575 = vunpack.c.l.b16 %v1499
        %v1576 = vunpack.c.l.b16 %v1500
        %v1577 = vunpack.c.l.b16 %v1501
        %v1578 = vunpack.c.l.b16 %v1502
        %v1579 = vunpack.c.l.b16 %v1503
        %v1580 = vunpack.c.l.b16 %v1504
        %v1581 = vunpack.c.l.b16 %v1505
        %v1582 = vunpack.c.l.b16 %v1506
        %v1583 = vunpack.c.l.b16 %v1507
        %v1584 = vunpack.c.l.b16 %v1508
        %v1585 = vunpack.c.l.b16 %v1509
        %v1586 = vunpack.c.l.b16 %v1510
        %v1587 = vunpack.c.l.b16 %v1511
        %v1588 = vunpack.c.l.b16 %v1512
        %v1589 = vunpack.c.l.b16 %v1513
        %v1590 = vunpack.c.l.b16 %v1514
        %v1591 = vunpack.c.l.b16 %v1515
        %v1592 = vunpack.c.l.b16 %v1516
        %v1593 = vpack.c.b16 %v1558, %v1557
        %v1594 = vpack.c.b16 %v1560, %v1559
        %v1595 = vpack.c.b16 %v1562, %v1561
        %v1596 = vpack.c.b16 %v1564, %v1563
        %v1597 = vpack.c.b16 %v1566, %v1565
        %v1598 = vpack.c.b16 %v1568, %v1567
        %v1599 = vpack.c.b16 %v1570, %v1569
        %v1600 = vpack.c.b16 %v1572, %v1571
        %v1601 = vpack.c.b16 %v1574, %v1573
        %v1602 = vpack.c.b16 %v1576, %v1575
        %v1603 = vpack.c.b16 %v1578, %v1577
        %v1604 = vpack.c.b16 %v1580, %v1579
        %v1605 = vpack.c.b16 %v1582, %v1581
        %v1606 = vpack.c.b16 %v1584, %v1583
        %v1607 = vpack.c.b16 %v1586, %v1585
        %v1608 = vpack.c.b16 %v1588, %v1587
        %v1609 = vpack.c.b16 %v1590, %v1589
        %v1610 = vpack.c.b16 %v1592, %v1591
        %v1630 = vsel %vm1358, %v1218, 0
        %v1633 = vsel %vm1358, %v1219, 0
        %v1636 = vsel %vm1358, %v1220, 0
        %v1639 = vsel %vm1358, %v1221, 0
        %v1642 = vsel %vm1358, %v1222, 0
        %v1645 = vsel %vm1358, %v1223, 0
        %v1648 = vsel %vm1358, %v1224, 0
        %v1651 = vsel %vm1358, %v1225, 0
        %1653 = vmatpush.bf16.msra.mxu0 %v1600
        %1654 = vmatpush.bf16.msra.mxu0 %v1599
        %1655 = vmatpush.bf16.msra.mxu0 %v1598
        %1656 = vmatpush.bf16.msra.mxu0 %v1597
        %1657 = vmatpush.bf16.msra.mxu0 %v1596
        %1658 = vmatpush.bf16.msra.mxu0 %v1595
        %1659 = vmatpush.bf16.msra.mxu0 %v1594
        %1660 = vmatpush.bf16.msra.mxu0 %v1593
        %1661 = vmatmul.bf16.gmra.mxu0 %v1402
        %v1662 = vpop.f32.mrf.mxu0
        %v1663 = vadd.f32 %v1519, %v1662
        %v1664 = vpop.f32.mrf.mxu0
        %v1665 = vadd.f32 %v1519, %v1664
        %1666 = vmatmul.bf16.gmra.mxu0 %v1405
        %v1667 = vpop.f32.mrf.mxu0
        %v1668 = vadd.f32 %v1519, %v1667
        %v1669 = vpop.f32.mrf.mxu0
        %v1670 = vadd.f32 %v1519, %v1669
        %1671 = vmatmul.bf16.gmra.mxu0 %v1408
        %v1672 = vpop.f32.mrf.mxu0
        %v1673 = vadd.f32 %v1519, %v1672
        %v1674 = vpop.f32.mrf.mxu0
        %v1675 = vadd.f32 %v1519, %v1674
        %1676 = vmatmul.bf16.gmra.mxu0 %v1411
        %v1677 = vpop.f32.mrf.mxu0
        %v1678 = vadd.f32 %v1519, %v1677
        %v1679 = vpop.f32.mrf.mxu0
        %v1680 = vadd.f32 %v1519, %v1679
        %1681 = vmatmul.bf16.gmra.mxu0 %v1414
        %v1682 = vpop.f32.mrf.mxu0
        %v1683 = vadd.f32 %v1519, %v1682
        %v1684 = vpop.f32.mrf.mxu0
        %v1685 = vadd.f32 %v1519, %v1684
        %1686 = vmatmul.bf16.gmra.mxu0 %v1417
        %v1687 = vpop.f32.mrf.mxu0
        %v1688 = vadd.f32 %v1519, %v1687
        %v1689 = vpop.f32.mrf.mxu0
        %v1690 = vadd.f32 %v1519, %v1689
        %1691 = vmatmul.bf16.gmra.mxu0 %v1420
        %v1692 = vpop.f32.mrf.mxu0
        %v1693 = vadd.f32 %v1519, %v1692
        %v1694 = vpop.f32.mrf.mxu0
        %v1695 = vadd.f32 %v1519, %v1694
        %1696 = vmatmul.bf16.gmra.mxu0 %v1423
        %v1697 = vpop.f32.mrf.mxu0
        %v1698 = vadd.f32 %v1519, %v1697
        %v1699 = vpop.f32.mrf.mxu0
        %v1700 = vadd.f32 %v1519, %v1699
        %1701 = vdwg.mxu0
        %1702 = vmatpush.bf16.msra.mxu0 %v1608
        %1703 = vmatpush.bf16.msra.mxu0 %v1607
        %1704 = vmatpush.bf16.msra.mxu0 %v1606
        %1705 = vmatpush.bf16.msra.mxu0 %v1605
        %1706 = vmatpush.bf16.msra.mxu0 %v1604
        %1707 = vmatpush.bf16.msra.mxu0 %v1603
        %1708 = vmatpush.bf16.msra.mxu0 %v1602
        %1709 = vmatpush.bf16.msra.mxu0 %v1601
        %1710 = vmatmul.bf16.gmra.mxu0 %v1458
        %v1711 = vpop.f32.mrf.mxu0
        %v1712 = vadd.f32 %v1663, %v1711
        %v1713 = vpop.f32.mrf.mxu0
        %v1714 = vadd.f32 %v1665, %v1713
        %1715 = vmatmul.bf16.gmra.mxu0 %v1461
        %v1716 = vpop.f32.mrf.mxu0
        %v1717 = vadd.f32 %v1668, %v1716
        %v1718 = vpop.f32.mrf.mxu0
        %v1719 = vadd.f32 %v1670, %v1718
        %1720 = vmatmul.bf16.gmra.mxu0 %v1464
        %v1721 = vpop.f32.mrf.mxu0
        %v1722 = vadd.f32 %v1673, %v1721
        %v1723 = vpop.f32.mrf.mxu0
        %v1724 = vadd.f32 %v1675, %v1723
        %1725 = vmatmul.bf16.gmra.mxu0 %v1467
        %v1726 = vpop.f32.mrf.mxu0
        %v1727 = vadd.f32 %v1678, %v1726
        %v1728 = vpop.f32.mrf.mxu0
        %v1729 = vadd.f32 %v1680, %v1728
        %1730 = vmatmul.bf16.gmra.mxu0 %v1470
        %v1731 = vpop.f32.mrf.mxu0
        %v1732 = vadd.f32 %v1683, %v1731
        %v1733 = vpop.f32.mrf.mxu0
        %v1734 = vadd.f32 %v1685, %v1733
        %1735 = vmatmul.bf16.gmra.mxu0 %v1473
        %v1736 = vpop.f32.mrf.mxu0
        %v1737 = vadd.f32 %v1688, %v1736
        %v1738 = vpop.f32.mrf.mxu0
        %v1739 = vadd.f32 %v1690, %v1738
        %1740 = vmatmul.bf16.gmra.mxu0 %v1476
        %v1741 = vpop.f32.mrf.mxu0
        %v1742 = vadd.f32 %v1693, %v1741
        %v1743 = vpop.f32.mrf.mxu0
        %v1744 = vadd.f32 %v1695, %v1743
        %1745 = vmatmul.bf16.gmra.mxu0 %v1479
        %v1746 = vpop.f32.mrf.mxu0
        %v1747 = vadd.f32 %v1698, %v1746
        %v1748 = vpop.f32.mrf.mxu0
        %v1749 = vadd.f32 %v1700, %v1748
        %1750 = vdwg.mxu0
        %1751 = vmatpush.bf16.msra.mxu0 0
        %1752 = vmatpush.bf16.msra.mxu0 0
        %1753 = vmatpush.bf16.msra.mxu0 0
        %1754 = vmatpush.bf16.msra.mxu0 0
        %1755 = vmatpush.bf16.msra.mxu0 0
        %1756 = vmatpush.bf16.msra.mxu0 0
        %1757 = vmatpush.bf16.msra.mxu0 %v1610
        %1758 = vmatpush.bf16.msra.mxu0 %v1609
        %1759 = vmatmul.bf16.gmra.mxu0 %v1630
        %v1760 = vpop.f32.mrf.mxu0
        %v1761 = vadd.f32 %v1712, %v1760
        %v1762 = vpop.f32.mrf.mxu0
        %v1763 = vadd.f32 %v1714, %v1762
        %1764 = vmatmul.bf16.gmra.mxu0 %v1633
        %v1765 = vpop.f32.mrf.mxu0
        %v1766 = vadd.f32 %v1717, %v1765
        %v1767 = vpop.f32.mrf.mxu0
        %v1768 = vadd.f32 %v1719, %v1767
        %1769 = vmatmul.bf16.gmra.mxu0 %v1636
        %v1770 = vpop.f32.mrf.mxu0
        %v1771 = vadd.f32 %v1722, %v1770
        %v1772 = vpop.f32.mrf.mxu0
        %v1773 = vadd.f32 %v1724, %v1772
        %1774 = vmatmul.bf16.gmra.mxu0 %v1639
        %v1775 = vpop.f32.mrf.mxu0
        %v1776 = vadd.f32 %v1727, %v1775
        %v1777 = vpop.f32.mrf.mxu0
        %v1778 = vadd.f32 %v1729, %v1777
        %1779 = vmatmul.bf16.gmra.mxu0 %v1642
        %v1780 = vpop.f32.mrf.mxu0
        %v1781 = vadd.f32 %v1732, %v1780
        %v1782 = vpop.f32.mrf.mxu0
        %v1783 = vadd.f32 %v1734, %v1782
        %1784 = vmatmul.bf16.gmra.mxu0 %v1645
        %v1785 = vpop.f32.mrf.mxu0
        %v1786 = vadd.f32 %v1737, %v1785
        %v1787 = vpop.f32.mrf.mxu0
        %v1788 = vadd.f32 %v1739, %v1787
        %1789 = vmatmul.bf16.gmra.mxu0 %v1648
        %v1790 = vpop.f32.mrf.mxu0
        %v1791 = vadd.f32 %v1742, %v1790
        %v1792 = vpop.f32.mrf.mxu0
        %v1793 = vadd.f32 %v1744, %v1792
        %1794 = vmatmul.bf16.gmra.mxu0 %v1651
        %v1795 = vpop.f32.mrf.mxu0
        %v1796 = vadd.f32 %v1747, %v1795
        %v1797 = vpop.f32.mrf.mxu0
        %v1798 = vadd.f32 %v1749, %v1797
        %1799 = vdwg.mxu0
        %v1800 = vmax.f32 %v1761, 0.0
        %v1801 = vmax.f32 %v1763, 0.0
        %v1802 = vmax.f32 %v1766, 0.0
        %v1803 = vmax.f32 %v1768, 0.0
        %v1804 = vmax.f32 %v1771, 0.0
        %v1805 = vmax.f32 %v1773, 0.0
        %v1806 = vmax.f32 %v1776, 0.0
        %v1807 = vmax.f32 %v1778, 0.0
        %v1808 = vmax.f32 %v1781, 0.0
        %v1809 = vmax.f32 %v1783, 0.0
        %v1810 = vmax.f32 %v1786, 0.0
        %v1811 = vmax.f32 %v1788, 0.0
        %v1812 = vmax.f32 %v1791, 0.0
        %v1813 = vmax.f32 %v1793, 0.0
        %v1814 = vmax.f32 %v1796, 0.0
        %v1815 = vmax.f32 %v1798, 0.0
        %v1816 = vpack.c.bf16 %v1801, %v1800
        %v1817 = vpack.c.bf16 %v1803, %v1802
        %v1818 = vpack.c.bf16 %v1805, %v1804
        %v1819 = vpack.c.bf16 %v1807, %v1806
        %v1820 = vpack.c.bf16 %v1809, %v1808
        %v1821 = vpack.c.bf16 %v1811, %v1810
        %v1822 = vpack.c.bf16 %v1813, %v1812
        %v1823 = vpack.c.bf16 %v1815, %v1814
        %v1824 = vld [vmem:[%s392] sm:$0xf]
        %v1825 = vld [vmem:[%s392 + $0x4] sm:$0xf]
        %v1826 = vld [vmem:[%s392 + $0x8] sm:$0xf]
        %v1827 = vld [vmem:[%s392 + $0xc] sm:$0xf]
        %v1828 = vld [vmem:[%s395] sm:$0x1]
        %v1830 = vperm.slane %v1828, 0
        %v1836 = vunpack.c.l.b16 %v1824
        %v1837 = vunpack.c.l.b16 %v1825
        %v1838 = vunpack.c.l.b16 %v1826
        %v1839 = vunpack.c.l.b16 %v1827
        %v1840 = vpack.c.b16 %v1837, %v1836
        %v1841 = vpack.c.b16 %v1839, %v1838
        %v1845 = vsel %vm1358, %v1816, 0
        %v1848 = vsel %vm1358, %v1817, 0
        %v1851 = vsel %vm1358, %v1818, 0
        %v1854 = vsel %vm1358, %v1819, 0
        %v1857 = vsel %vm1358, %v1820, 0
        %v1860 = vsel %vm1358, %v1821, 0
        %v1863 = vsel %vm1358, %v1822, 0
        %v1866 = vsel %vm1358, %v1823, 0
        %1868 = vmatpush.bf16.msra.mxu0 0
        %1869 = vmatpush.bf16.msra.mxu0 0
        %1870 = vmatpush.bf16.msra.mxu0 0
        %1871 = vmatpush.bf16.msra.mxu0 0
        %1872 = vmatpush.bf16.msra.mxu0 0
        %1873 = vmatpush.bf16.msra.mxu0 0
        %1874 = vmatpush.bf16.msra.mxu0 %v1841
        %1875 = vmatpush.bf16.msra.mxu0 %v1840
        %1876 = vmatmul.bf16.gmra.mxu0 %v1845
        %v1877 = vpop.f32.mrf.mxu0
        %v1878 = vadd.f32 %v1830, %v1877
        %v1879 = vpop.f32.mrf.mxu0
        %v1880 = vadd.f32 %v1830, %v1879
        %1881 = vmatmul.bf16.gmra.mxu0 %v1848
        %v1882 = vpop.f32.mrf.mxu0
        %v1883 = vadd.f32 %v1830, %v1882
        %v1884 = vpop.f32.mrf.mxu0
        %v1885 = vadd.f32 %v1830, %v1884
        %1886 = vmatmul.bf16.gmra.mxu0 %v1851
        %v1887 = vpop.f32.mrf.mxu0
        %v1888 = vadd.f32 %v1830, %v1887
        %v1889 = vpop.f32.mrf.mxu0
        %v1890 = vadd.f32 %v1830, %v1889
        %1891 = vmatmul.bf16.gmra.mxu0 %v1854
        %v1892 = vpop.f32.mrf.mxu0
        %v1893 = vadd.f32 %v1830, %v1892
        %v1894 = vpop.f32.mrf.mxu0
        %v1895 = vadd.f32 %v1830, %v1894
        %1896 = vmatmul.bf16.gmra.mxu0 %v1857
        %v1897 = vpop.f32.mrf.mxu0
        %v1898 = vadd.f32 %v1830, %v1897
        %v1899 = vpop.f32.mrf.mxu0
        %v1900 = vadd.f32 %v1830, %v1899
        %1901 = vmatmul.bf16.gmra.mxu0 %v1860
        %v1902 = vpop.f32.mrf.mxu0
        %v1903 = vadd.f32 %v1830, %v1902
        %v1904 = vpop.f32.mrf.mxu0
        %v1905 = vadd.f32 %v1830, %v1904
        %1906 = vmatmul.bf16.gmra.mxu0 %v1863
        %v1907 = vpop.f32.mrf.mxu0
        %v1908 = vadd.f32 %v1830, %v1907
        %v1909 = vpop.f32.mrf.mxu0
        %v1910 = vadd.f32 %v1830, %v1909
        %1911 = vmatmul.bf16.gmra.mxu0 %v1866
        %v1912 = vpop.f32.mrf.mxu0
        %v1913 = vadd.f32 %v1830, %v1912
        %v1914 = vpop.f32.mrf.mxu0
        %v1915 = vadd.f32 %v1830, %v1914
        %1916 = vdwg.mxu0
        %v1917 = vadd.f32 %v1878, %v436
        %v1918 = vadd.f32 %v1880, %v437
        %v1919 = vadd.f32 %v1883, %v438
        %v1920 = vadd.f32 %v1885, %v439
        %v1921 = vadd.f32 %v1888, %v440
        %v1922 = vadd.f32 %v1890, %v441
        %v1923 = vadd.f32 %v1893, %v442
        %v1924 = vadd.f32 %v1895, %v443
        %v1925 = vadd.f32 %v1898, %v444
        %v1926 = vadd.f32 %v1900, %v445
        %v1927 = vadd.f32 %v1903, %v446
        %v1928 = vadd.f32 %v1905, %v447
        %v1929 = vadd.f32 %v1908, %v448
        %v1930 = vadd.f32 %v1910, %v449
        %v1931 = vadd.f32 %v1913, %v450
        %v1932 = vadd.f32 %v1915, %v451
        %v1933 = vmax.f32 %v1917, 0.0
        %v1934 = vmax.f32 %v1918, 0.0
        %v1935 = vmax.f32 %v1919, 0.0
        %v1936 = vmax.f32 %v1920, 0.0
        %v1937 = vmax.f32 %v1921, 0.0
        %v1938 = vmax.f32 %v1922, 0.0
        %v1939 = vmax.f32 %v1923, 0.0
        %v1940 = vmax.f32 %v1924, 0.0
        %v1941 = vmax.f32 %v1925, 0.0
        %v1942 = vmax.f32 %v1926, 0.0
        %v1943 = vmax.f32 %v1927, 0.0
        %v1944 = vmax.f32 %v1928, 0.0
        %v1945 = vmax.f32 %v1929, 0.0
        %v1946 = vmax.f32 %v1930, 0.0
        %v1947 = vmax.f32 %v1931, 0.0
        %v1948 = vmax.f32 %v1932, 0.0
        %1949 = vst [vmem:[%s364] sm:$0xff] %v1933
        %1950 = vst [vmem:[%s364 + $0x8] sm:$0xff] %v1934
        %1951 = vst [vmem:[%s364 + $0x10] sm:$0xff] %v1935
        %1952 = vst [vmem:[%s364 + $0x18] sm:$0xff] %v1936
        %1953 = vst [vmem:[%s364 + $0x20] sm:$0xff] %v1937
        %1954 = vst [vmem:[%s364 + $0x28] sm:$0xff] %v1938
        %1955 = vst [vmem:[%s364 + $0x30] sm:$0xff] %v1939
        %1956 = vst [vmem:[%s364 + $0x38] sm:$0xff] %v1940
        %1957 = vst [vmem:[%s364 + $0x40] sm:$0xff] %v1941
        %1958 = vst [vmem:[%s364 + $0x48] sm:$0xff] %v1942
        %1959 = vst [vmem:[%s364 + $0x50] sm:$0xff] %v1943
        %1960 = vst [vmem:[%s364 + $0x58] sm:$0xff] %v1944
        %1961 = vst [vmem:[%s364 + $0x60] sm:$0xff] %v1945
        %1962 = vst [vmem:[%s364 + $0x68] sm:$0xff] %v1946
        %1963 = vst [vmem:[%s364 + $0x70] sm:$0xff] %v1947
        %1964 = vst [vmem:[%s364 + $0x78] sm:$0xff] %v1948
        %s1965 = sand.u32 %s223, 1
        %s1966 = scalar_lea.sflag [#allocation3], %s1965
        %s1967 = sand.u32 %s223, 1
        %s1968 = smul.addr %s1967, 128
        %s1969 = scalar_lea.vmem [#allocation2], %s1968
        // Predicated region
        $region53: #{tpu_custom_call.1} parent=47 // pred_check
          %p1970 = pneg %p233
        $region54: #{tpu_custom_call.1} parent=47 // pred_check_branch
          %1972 = sbr.rel (%p1970) target = $region56
        $region55: #{tpu_custom_call.1} parent=47 // pred_region
          %s1973 = smul.u32 2, %s25
          %1975 = vsyncadd %s1966, 0
          %s1976 = smul.addr %s1973, 8
          %s1977 = smul.addr %s1976, 8
          %s1978 = scalar_lea.hbm %s7, %s1977
          %s1979 = sshll.u32 %s1969, 4
          %s1980 = int_to_ptr.vmem [resolvable:$true] %s1979
          %s1981 = sshll.u32 %s1978, 4
          %s1982 = int_to_ptr.hbm [resolvable:$true] %s1981
          %1987 = dma.vmem_to_hbm [thread:$0]  %s1980, 2048, %s1982, %s1966, 128, 128, 8
        $region56: #{tpu_custom_call.1} parent=47 // pred_fallthru
          _
      $region48: #{tpu_custom_call.1} parent=5 // pred_fallthru
        _
      %p1988 = scmp.le.s32.totalorder 2, %s16
      // Predicated region
      $region57: #{tpu_custom_call.1} parent=5 // pred_check
        %p1989 = pneg %p1988
      $region58: #{tpu_custom_call.1} parent=5 // pred_check_branch
        %1991 = sbr.rel (%p1989) target = $region60
      $region59: #{tpu_custom_call.1} parent=5 // pred_region
        %s1992 = ssub.s32 %s16, 2
        // Predicated region
        $region61: #{tpu_custom_call.1} parent=59 // pred_check
          %p1993 = pneg %p239
        $region62: #{tpu_custom_call.1} parent=59 // pred_check_branch
          %1995 = sbr.rel (%p1993) target = $region64
        $region63: #{tpu_custom_call.1} parent=59 // pred_region
          %s1996 = sand.u32 %s224, 1
          %s1997 = scalar_lea.sflag [#allocation3], %s1996
          %s1998 = sand.u32 %s224, 1
          %s1999 = smul.addr %s1998, 128
          %s2000 = scalar_lea.vmem [#allocation2], %s1999
          %2002 = dma.done %s1997, 2048
        $region64: #{tpu_custom_call.1} parent=59 // pred_fallthru
          _
      $region60: #{tpu_custom_call.1} parent=5 // pred_fallthru
        _
    $region6: #{tpu_custom_call.1} parent=1 // loop_footer
      %s20 = sadd.s32 1, %s16
    $region7: #{tpu_custom_call.1} parent=1 // loop_footer_branch
      %15 = sbr.rel target = $region3
    $region8: #{tpu_custom_call.1} parent=1 // loop_exit
      _
    %2003 = vsyncpa [#allocation3], 1
    %s2004 = scalar_lea.sflag [#allocation3], 1
    %2005 = vsyncpa %s2004, 1

</llo_original>
